<compile_context>
chip_gen: v7x
topology: tpu7x:2x2x1
jax: 0.10.0
libtpu: 0.0.40
codegen_flags: <defaults>
</compile_context>

<pallas_src>
import functools

import jax
import jax.numpy as jnp
from jax.experimental import pallas as pl
from jax.experimental.pallas import tpu as pltpu

LN_EPS = 1e-5


# ---------------------------------------------------------------------------
# helpers
# ---------------------------------------------------------------------------
def _vmem_limit_bytes():
    try:
        cap = pltpu.get_tpu_info().vmem_capacity_bytes
        return int(min(cap * 3 // 4, 100 * 1024 * 1024))
    except Exception:  # pragma: no cover - conservative fallback
        return 48 * 1024 * 1024


_VMEM_LIMIT = _vmem_limit_bytes()


def _hidden_tile(h):
    """Largest 128-multiple tile <= 2048 that evenly divides the FFN hidden dim."""
    for t in (2048, 1024, 512, 256, 128):
        if h % t == 0:
            return t
    return h


def _text_dropout_mask(key, batch, rate, dtype):
    # torch: (torch.rand(B,1,1) > rate).float()
    return (jax.random.uniform(key, (batch, 1, 1)) > rate).astype(dtype)


# ---------------------------------------------------------------------------
# kernel: fully fused attention block
#   out = LN( (softmax(QK^T/sqrt(Dh)) V) @ Wo + bo + residual ) * gamma + beta
#   with Q = x_q @ Wq + bq,  [K|V] = x_kv @ Wkv + bkv
# One grid step == one batch element, all heads processed inside.
# ---------------------------------------------------------------------------
def _fused_attn_kernel(q_ref, kv_ref, res_ref, wq_ref, bq_ref, wkv_ref, bkv_ref,
                       wo_ref, bo_ref, g_ref, beta_ref, o_ref,
                       *, num_heads, scale, inv_e):
    e = wq_ref.shape[0]
    dh = e // num_heads

    x_q = q_ref[0]                      # (Sq, E)
    x_kv = kv_ref[0]                    # (Sk, E)

    # Projections (f32 accumulation on the MXU).
    q = jnp.dot(x_q, wq_ref[...], preferred_element_type=jnp.float32)
    q = q + bq_ref[...].astype(jnp.float32)
    kv = jnp.dot(x_kv, wkv_ref[...], preferred_element_type=jnp.float32)
    kv = kv + bkv_ref[...].astype(jnp.float32)
    k = kv[:, :e]
    v = kv[:, e:]

    sq = x_q.shape[0]
    acc = jnp.zeros((sq, e), jnp.float32)   # lane-dense (E-wide) output slab

    # Per-head softmax attention; each head's output is immediately folded into
    # the E-wide out-projection accumulator (no Dh-wide stores, no concat).
    for h in range(num_heads):
        lo, hi = h * dh, (h + 1) * dh
        qh = q[:, lo:hi]
        kh = k[:, lo:hi]
        vh = v[:, lo:hi]
        s = jax.lax.dot_general(qh, kh, (((1,), (1,)), ((), ())),
                                preferred_element_type=jnp.float32) * scale
        m = jnp.max(s, axis=-1, keepdims=True)
        p = jnp.exp(s - m)
        l = jnp.sum(p, axis=-1, keepdims=True)
        oh = jnp.dot(p, vh, preferred_element_type=jnp.float32)
        oh = oh * pl.reciprocal(l, approx=True)
        acc = acc + jnp.dot(oh, wo_ref[lo:hi, :],
                            preferred_element_type=jnp.float32)

    # out-proj bias + residual + LayerNorm epilogue (f32, rsqrt, no divides).
    y = acc + bo_ref[...].astype(jnp.float32) + res_ref[0].astype(jnp.float32)
    mean = jnp.sum(y, axis=-1, keepdims=True) * inv_e
    centered = y - mean
    var = jnp.sum(centered * centered, axis=-1, keepdims=True) * inv_e
    normed = centered * jax.lax.rsqrt(var + LN_EPS)
    o_ref[0] = (normed * g_ref[...].astype(jnp.float32)
                + beta_ref[...].astype(jnp.float32)).astype(o_ref.dtype)


def _fused_attn_block(p, q_src, kv_src, residual, gamma, beta, num_heads):
    b, sq, e = q_src.shape
    _, sk, _ = kv_src.shape
    dh = e // num_heads
    kernel = functools.partial(_fused_attn_kernel, num_heads=num_heads,
                               scale=1.0 / (dh ** 0.5), inv_e=1.0 / e)
    return pl.pallas_call(
        kernel,
        out_shape=jax.ShapeDtypeStruct((b, sq, e), q_src.dtype),
        grid_spec=pltpu.PrefetchScalarGridSpec(
            num_scalar_prefetch=0,
            grid=(b,),
            in_specs=[
                pl.BlockSpec((1, sq, e), lambda i: (i, 0, 0)),      # q source
                pl.BlockSpec((1, sk, e), lambda i: (i, 0, 0)),      # kv source
                pl.BlockSpec((1, sq, e), lambda i: (i, 0, 0)),      # residual
                pl.BlockSpec((e, e), lambda i: (0, 0)),             # Wq
                pl.BlockSpec((1, e), lambda i: (0, 0)),             # bq
                pl.BlockSpec((e, 2 * e), lambda i: (0, 0)),         # Wkv (packed)
                pl.BlockSpec((1, 2 * e), lambda i: (0, 0)),         # bkv
                pl.BlockSpec((e, e), lambda i: (0, 0)),             # Wo
                pl.BlockSpec((1, e), lambda i: (0, 0)),             # bo
                pl.BlockSpec((1, e), lambda i: (0, 0)),             # gamma
                pl.BlockSpec((1, e), lambda i: (0, 0)),             # beta
            ],
            out_specs=pl.BlockSpec((1, sq, e), lambda i: (i, 0, 0)),
        ),
        compiler_params=pltpu.CompilerParams(
            dimension_semantics=("parallel",),
            vmem_limit_bytes=_VMEM_LIMIT),
    )(q_src, kv_src, residual,
      p['wq'], p['bq'].reshape(1, e),
      p['wkv'], p['bkv'].reshape(1, 2 * e),
      p['wo'], p['bo'].reshape(1, e),
      gamma.reshape(1, e), beta.reshape(1, e))


# ---------------------------------------------------------------------------
# kernel: fused FFN + residual, hidden dim tiled over a reduction grid axis
#   out = x + relu(x @ W1 + b1) @ W2 + b2
# ---------------------------------------------------------------------------
def _ffn_kernel(x_ref, w1_ref, b1_ref, w2_ref, b2_ref, o_ref, acc_ref):
    kh = pl.program_id(1)

    @pl.when(kh == 0)
    def _():
        acc_ref[...] = jnp.zeros_like(acc_ref)

    x = x_ref[0]                                               # (S, E)
    h = jnp.dot(x, w1_ref[...], preferred_element_type=jnp.float32)
    h = jnp.maximum(h + b1_ref[...].astype(jnp.float32), 0.0)
    acc_ref[...] += jnp.dot(h, w2_ref[...], preferred_element_type=jnp.float32)

    @pl.when(kh == pl.num_programs(1) - 1)
    def _():
        y = acc_ref[...] + b2_ref[...].astype(jnp.float32) + x.astype(jnp.float32)
        o_ref[0] = y.astype(o_ref.dtype)


def _ffn_residual(x, w1, b1, w2, b2):
    b, s, e = x.shape
    hdim = w1.shape[1]
    th = _hidden_tile(hdim)
    nk = hdim // th
    return pl.pallas_call(
        _ffn_kernel,
        out_shape=jax.ShapeDtypeStruct((b, s, e), x.dtype),
        grid_spec=pltpu.PrefetchScalarGridSpec(
            num_scalar_prefetch=0,
            grid=(b, nk),
            in_specs=[
                pl.BlockSpec((1, s, e), lambda i, k: (i, 0, 0)),
                pl.BlockSpec((e, th), lambda i, k: (0, k)),
                pl.BlockSpec((1, th), lambda i, k: (0, k)),
                pl.BlockSpec((th, e), lambda i, k: (k, 0)),
                pl.BlockSpec((1, e), lambda i, k: (0, 0)),
            ],
            out_specs=pl.BlockSpec((1, s, e), lambda i, k: (i, 0, 0)),
            scratch_shapes=[pltpu.VMEM((s, e), jnp.float32)],
        ),
        compiler_params=pltpu.CompilerParams(
            dimension_semantics=("parallel", "arbitrary"),
            vmem_limit_bytes=_VMEM_LIMIT),
    )(x, w1, b1.reshape(1, hdim), w2, b2.reshape(1, e))


# ---------------------------------------------------------------------------
# kernel: plain LayerNorm (only for the "no text / no query" branch)
# ---------------------------------------------------------------------------
def _ln_kernel(x_ref, g_ref, b_ref, o_ref, *, inv_c):
    x = x_ref[0].astype(jnp.float32)
    mean = jnp.sum(x, axis=-1, keepdims=True) * inv_c
    centered = x - mean
    var = jnp.sum(centered * centered, axis=-1, keepdims=True) * inv_c
    normed = centered * jax.lax.rsqrt(var + LN_EPS)
    o_ref[0] = (normed * g_ref[...].astype(jnp.float32)
                + b_ref[...].astype(jnp.float32)).astype(o_ref.dtype)


def _layer_norm(x, gamma, beta):
    b, s, e = x.shape
    kernel = functools.partial(_ln_kernel, inv_c=1.0 / e)
    return pl.pallas_call(
        kernel,
        out_shape=jax.ShapeDtypeStruct((b, s, e), x.dtype),
        grid_spec=pltpu.PrefetchScalarGridSpec(
            num_scalar_prefetch=0,
            grid=(b,),
            in_specs=[pl.BlockSpec((1, s, e), lambda i: (i, 0, 0)),
                      pl.BlockSpec((1, e), lambda i: (0, 0)),
                      pl.BlockSpec((1, e), lambda i: (0, 0))],
            out_specs=pl.BlockSpec((1, s, e), lambda i: (i, 0, 0)),
        ),
        compiler_params=pltpu.CompilerParams(
            dimension_semantics=("parallel",),
            vmem_limit_bytes=_VMEM_LIMIT),
    )(x, gamma.reshape(1, e), beta.reshape(1, e))


# ---------------------------------------------------------------------------
# module
# ---------------------------------------------------------------------------
class CrossModalAttentionLayerWithPartialTrainingPallas:
    """Pallas port of the PyTorch module (eval-mode forward).

    image_to_text_attention, fusion_layer, norm_image_text and norm_fusion are
    declared by the PyTorch module but never used in forward(); they are omitted.
    """
    # TODO(synk): attention/FFN nn.Dropout layers are eval-mode identities here;
    # training-mode dropout would need pltpu.prng_* inside the kernels.

    def __init__(self, embed_dim, num_heads, dropout=0.1, text_dropout_rate=0.2,
                 key=jax.random.PRNGKey(42), dtype=jnp.float32):
        assert embed_dim % num_heads == 0
        self.embed_dim = embed_dim
        self.num_heads = num_heads
        self.head_dim = embed_dim // num_heads
        self.text_dropout_rate = text_dropout_rate
        self.dtype = dtype

        keys = list(jax.random.split(key, 32))
        kit = iter(keys)

        def linear_init(fan_in, fan_out):
            bound = 1.0 / (fan_in ** 0.5)
            w = jax.random.uniform(next(kit), (fan_in, fan_out), dtype, -bound, bound)
            b = jax.random.uniform(next(kit), (fan_out,), dtype, -bound, bound)
            return w, b

        def mha_init():
            wq, bq = linear_init(embed_dim, embed_dim)        # query projection
            wkv, bkv = linear_init(embed_dim, 2 * embed_dim)  # packed K/V projection
            wo, bo = linear_init(embed_dim, embed_dim)        # output projection
            return dict(wq=wq, bq=bq, wkv=wkv, bkv=bkv, wo=wo, bo=bo)

        self.expert_to_text_attention = mha_init()
        self.expert_to_query_attention = mha_init()
        self.expert_to_fused_attention = mha_init()
        self.expert_self_attention = mha_init()
        self.ffn_w1, self.ffn_b1 = linear_init(embed_dim, 4 * embed_dim)
        self.ffn_w2, self.ffn_b2 = linear_init(4 * embed_dim, embed_dim)
        self.norm_expert_gamma = jnp.ones((embed_dim,), dtype)
        self.norm_expert_beta = jnp.zeros((embed_dim,), dtype)

    def _mha(self, p, q_src, kv_src, residual):
        return _fused_attn_block(p, q_src, kv_src, residual,
                                 self.norm_expert_gamma, self.norm_expert_beta,
                                 self.num_heads)

    def __call__(self, image_patches, text_embeddings=None, expert_tokens=None,
                 query_embeddings=None, *, text_dropout_key=None):
        if text_embeddings is not None:
            if text_dropout_key is not None:
                mask = _text_dropout_mask(text_dropout_key, text_embeddings.shape[0],
                                          self.text_dropout_rate, text_embeddings.dtype)
                text_embeddings = text_embeddings * mask
            attended = self._mha(self.expert_to_text_attention, expert_tokens,
                                 text_embeddings, expert_tokens)
        elif query_embeddings is not None:
            attended = self._mha(self.expert_to_query_attention, expert_tokens,
                                 query_embeddings, expert_tokens)
        else:
            attended = _layer_norm(expert_tokens, self.norm_expert_gamma,
                                   self.norm_expert_beta)

        expert_to_fused = self._mha(self.expert_to_fused_attention, attended,
                                    image_patches, attended)

        expert_features = _ffn_residual(expert_to_fused, self.ffn_w1, self.ffn_b1,
                                        self.ffn_w2, self.ffn_b2)

        # self-attention: q == kv == expert_features, residual == expert_to_fused
        out = self._mha(self.expert_self_attention, expert_features,
                        expert_features, expert_to_fused)
        return out


# ---------------------------------------------------------------------------
# pure-JAX reference of the PyTorch forward (eval mode)
# ---------------------------------------------------------------------------
_HP = jax.lax.Precision.HIGHEST


def _ref_mha(p, q_src, kv_src, num_heads):
    b, sq, e = q_src.shape
    _, sk, _ = kv_src.shape
    dh = e // num_heads
    q = jnp.einsum('bsd,de->bse', q_src, p['wq'], precision=_HP) + p['bq']
    k = jnp.einsum('bsd,de->bse', kv_src, p['wkv'][:, :e], precision=_HP) + p['bkv'][:e]
    v = jnp.einsum('bsd,de->bse', kv_src, p['wkv'][:, e:], precision=_HP) + p['bkv'][e:]

    def heads(x, s):
        return x.reshape(b, s, num_heads, dh).transpose(0, 2, 1, 3)

    qh, kh, vh = heads(q, sq), heads(k, sk), heads(v, sk)
    s = jnp.einsum('bhqd,bhkd->bhqk', qh, kh, precision=_HP) / (dh ** 0.5)
    a = jax.nn.softmax(s, axis=-1)
    o = jnp.einsum('bhqk,bhkd->bhqd', a, vh, precision=_HP)
    o = o.transpose(0, 2, 1, 3).reshape(b, sq, e)
    return jnp.einsum('bsd,de->bse', o, p['wo'], precision=_HP) + p['bo']


def _ref_ln(x, gamma, beta):
    mean = jnp.mean(x, axis=-1, keepdims=True)
    var = jnp.mean((x - mean) ** 2, axis=-1, keepdims=True)
    return (x - mean) / jnp.sqrt(var + LN_EPS) * gamma + beta


def _reference_forward(model, image_patches, text_embeddings=None, expert_tokens=None,
                       query_embeddings=None, text_dropout_key=None):
    g, be = model.norm_expert_gamma, model.norm_expert_beta
    if text_embeddings is not None:
        if text_dropout_key is not None:
            mask = _text_dropout_mask(text_dropout_key, text_embeddings.shape[0],
                                      model.text_dropout_rate, text_embeddings.dtype)
            text_embeddings = text_embeddings * mask
        att = _ref_mha(model.expert_to_text_attention, expert_tokens,
                       text_embeddings, model.num_heads)
        attended = _ref_ln(att + expert_tokens, g, be)
    elif query_embeddings is not None:
        att = _ref_mha(model.expert_to_query_attention, expert_tokens,
                       query_embeddings, model.num_heads)
        attended = _ref_ln(att + expert_tokens, g, be)
    else:
        attended = _ref_ln(expert_tokens, g, be)
    e2f = _ref_mha(model.expert_to_fused_attention, attended, image_patches, model.num_heads)
    e2f = _ref_ln(e2f + attended, g, be)
    hidden = jnp.maximum(
        jnp.einsum('bsd,dh->bsh', e2f, model.ffn_w1, precision=_HP) + model.ffn_b1, 0.0)
    ff = jnp.einsum('bsh,hd->bsd', hidden, model.ffn_w2, precision=_HP) + model.ffn_b2
    ef = e2f + ff
    sa = _ref_mha(model.expert_self_attention, ef, ef, model.num_heads)
    return _ref_ln(sa + e2f, g, be)


# ---------------------------------------------------------------------------
# demo / self-test
# ---------------------------------------------------------------------------
if __name__ == "__main__":
    embed_dim, num_heads = 128, 4
    batch = 2
    img_seq, txt_seq, exp_seq, qry_seq = 16, 8, 4, 8

    root = jax.random.PRNGKey(0)
    k_img, k_txt, k_exp, k_qry, k_drop, k_param = jax.random.split(root, 6)

    image_patches = jax.random.normal(k_img, (batch, img_seq, embed_dim), jnp.float32)
    text_embeddings = jax.random.normal(k_txt, (batch, txt_seq, embed_dim), jnp.float32)
    expert_tokens = jax.random.normal(k_exp, (batch, exp_seq, embed_dim), jnp.float32)
    query_embeddings = jax.random.normal(k_qry, (batch, qry_seq, embed_dim), jnp.float32)

    model = CrossModalAttentionLayerWithPartialTrainingPallas(
        embed_dim, num_heads, key=k_param)

    # --- text branch (stochastic text dropout driven by an explicit key) ---
    out_text = model(image_patches, text_embeddings=text_embeddings,
                     expert_tokens=expert_tokens, text_dropout_key=k_drop)
    out_text = jax.block_until_ready(out_text)
    ref_text = _reference_forward(model, image_patches, text_embeddings=text_embeddings,
                                  expert_tokens=expert_tokens, text_dropout_key=k_drop)
    assert out_text.shape == (batch, exp_seq, embed_dim)
    assert bool(jnp.all(jnp.isfinite(out_text)))
    assert jnp.allclose(out_text, ref_text, atol=3e-3, rtol=3e-3)

    # --- query branch ---
    out_qry = model(image_patches, expert_tokens=expert_tokens,
                    query_embeddings=query_embeddings)
    out_qry = jax.block_until_ready(out_qry)
    ref_qry = _reference_forward(model, image_patches, expert_tokens=expert_tokens,
                                 query_embeddings=query_embeddings)
    assert jnp.allclose(out_qry, ref_qry, atol=3e-3, rtol=3e-3)

    # --- neither text nor query: plain LayerNorm path ---
    out_none = model(image_patches, expert_tokens=expert_tokens)
    out_none = jax.block_until_ready(out_none)
    ref_none = _reference_forward(model, image_patches, expert_tokens=expert_tokens)
    assert jnp.allclose(out_none, ref_none, atol=3e-3, rtol=3e-3)

    print("KERNEL_OK")
</pallas_src>

<mosaic_0001>
module attributes {stable_mosaic.version = 11 : i64} {
  func.func @_fused_attn_kernel(%arg0: i32, %arg1: memref<1x4x128xf32, #tpu.memory_space<vmem>>, %arg2: memref<1x8x128xf32, #tpu.memory_space<vmem>>, %arg3: memref<1x4x128xf32, #tpu.memory_space<vmem>>, %arg4: memref<128x128xf32, #tpu.memory_space<vmem>>, %arg5: memref<1x128xf32, #tpu.memory_space<vmem>>, %arg6: memref<128x256xf32, #tpu.memory_space<vmem>>, %arg7: memref<1x256xf32, #tpu.memory_space<vmem>>, %arg8: memref<128x128xf32, #tpu.memory_space<vmem>>, %arg9: memref<1x128xf32, #tpu.memory_space<vmem>>, %arg10: memref<1x128xf32, #tpu.memory_space<vmem>>, %arg11: memref<1x128xf32, #tpu.memory_space<vmem>>, %arg12: memref<1x4x128xf32, #tpu.memory_space<vmem>>) attributes {dimension_semantics = [#tpu.dimension_semantics<parallel>], iteration_bounds = array<i64: 2>, scalar_prefetch = 0 : i64, scratch_operands = 0 : i64, tpu.core_type = #tpu.core_type<tc>, window_params = [{transform_indices = @transform_0, window_bounds = array<i64: 1, 4, 128>}, {transform_indices = @transform_1, window_bounds = array<i64: 1, 8, 128>}, {transform_indices = @transform_2, window_bounds = array<i64: 1, 4, 128>}, {pipeline_mode = #tpu.pipeline_mode<synchronous>, transform_indices = @transform_3, window_bounds = array<i64: 128, 128>}, {pipeline_mode = #tpu.pipeline_mode<synchronous>, transform_indices = @transform_4, window_bounds = array<i64: 1, 128>}, {pipeline_mode = #tpu.pipeline_mode<synchronous>, transform_indices = @transform_5, window_bounds = array<i64: 128, 256>}, {pipeline_mode = #tpu.pipeline_mode<synchronous>, transform_indices = @transform_6, window_bounds = array<i64: 1, 256>}, {pipeline_mode = #tpu.pipeline_mode<synchronous>, transform_indices = @transform_7, window_bounds = array<i64: 128, 128>}, {pipeline_mode = #tpu.pipeline_mode<synchronous>, transform_indices = @transform_8, window_bounds = array<i64: 1, 128>}, {pipeline_mode = #tpu.pipeline_mode<synchronous>, transform_indices = @transform_9, window_bounds = array<i64: 1, 128>}, {pipeline_mode = #tpu.pipeline_mode<synchronous>, transform_indices = @transform_10, window_bounds = array<i64: 1, 128>}, {transform_indices = @transform_11, window_bounds = array<i64: 1, 4, 128>}]} {
    %c0 = arith.constant 0 : index
    %c0_0 = arith.constant 0 : index
    %c0_1 = arith.constant 0 : index
    %0 = vector.load %arg1[%c0, %c0_0, %c0_1] : memref<1x4x128xf32, #tpu.memory_space<vmem>>, vector<1x4x128xf32>
    %1 = vector.shape_cast %0 : vector<1x4x128xf32> to vector<4x128xf32>
    %c0_2 = arith.constant 0 : index
    %c0_3 = arith.constant 0 : index
    %c0_4 = arith.constant 0 : index
    %2 = vector.load %arg2[%c0_2, %c0_3, %c0_4] : memref<1x8x128xf32, #tpu.memory_space<vmem>>, vector<1x8x128xf32>
    %3 = vector.shape_cast %2 : vector<1x8x128xf32> to vector<8x128xf32>
    %c0_5 = arith.constant 0 : index
    %c0_6 = arith.constant 0 : index
    %4 = vector.load %arg4[%c0_5, %c0_6] : memref<128x128xf32, #tpu.memory_space<vmem>>, vector<128x128xf32>
    %cst = arith.constant dense<0.000000e+00> : vector<4x128xf32>
    %5 = tpu.matmul %1, %4, %cst {dimension_numbers = #tpu.dot_dimension_numbers<[1], [0], [0], [1], [0, 0, 1, 1], [], []>} : vector<4x128xf32>, vector<128x128xf32>, vector<4x128xf32> -> vector<4x128xf32>
    %c0_7 = arith.constant 0 : index
    %c0_8 = arith.constant 0 : index
    %6 = vector.load %arg5[%c0_7, %c0_8] : memref<1x128xf32, #tpu.memory_space<vmem>>, vector<1x128xf32>
    %7 = vector.broadcast %6 : vector<1x128xf32> to vector<4x128xf32>
    %8 = arith.addf %5, %7 : vector<4x128xf32>
    %c0_9 = arith.constant 0 : index
    %c0_10 = arith.constant 0 : index
    %9 = vector.load %arg6[%c0_9, %c0_10] : memref<128x256xf32, #tpu.memory_space<vmem>>, vector<128x256xf32>
    %cst_11 = arith.constant dense<0.000000e+00> : vector<8x256xf32>
    %10 = tpu.matmul %3, %9, %cst_11 {dimension_numbers = #tpu.dot_dimension_numbers<[1], [0], [0], [1], [0, 0, 1, 1], [], []>} : vector<8x128xf32>, vector<128x256xf32>, vector<8x256xf32> -> vector<8x256xf32>
    %c0_12 = arith.constant 0 : index
    %c0_13 = arith.constant 0 : index
    %11 = vector.load %arg7[%c0_12, %c0_13] : memref<1x256xf32, #tpu.memory_space<vmem>>, vector<1x256xf32>
    %12 = vector.broadcast %11 : vector<1x256xf32> to vector<8x256xf32>
    %13 = arith.addf %10, %12 : vector<8x256xf32>
    %14 = vector.extract_strided_slice %13 {offsets = [0, 0], sizes = [8, 128], strides = [1, 1]} : vector<8x256xf32> to vector<8x128xf32>
    %15 = vector.extract_strided_slice %13 {offsets = [0, 128], sizes = [8, 128], strides = [1, 1]} : vector<8x256xf32> to vector<8x128xf32>
    %cst_14 = arith.constant 0.000000e+00 : f32
    %16 = vector.broadcast %cst_14 : f32 to vector<4x128xf32>
    %17 = vector.extract_strided_slice %8 {offsets = [0, 0], sizes = [4, 32], strides = [1, 1]} : vector<4x128xf32> to vector<4x32xf32>
    %18 = vector.extract_strided_slice %14 {offsets = [0, 0], sizes = [8, 32], strides = [1, 1]} : vector<8x128xf32> to vector<8x32xf32>
    %19 = vector.extract_strided_slice %15 {offsets = [0, 0], sizes = [8, 32], strides = [1, 1]} : vector<8x128xf32> to vector<8x32xf32>
    %cst_15 = arith.constant dense<0.000000e+00> : vector<4x8xf32>
    %20 = tpu.matmul %17, %18, %cst_15 {dimension_numbers = #tpu.dot_dimension_numbers<[1], [1], [0], [0], [0, 0, 1, 0], [], []>} : vector<4x32xf32>, vector<8x32xf32>, vector<4x8xf32> -> vector<4x8xf32>
    %cst_16 = arith.constant 0.176776692 : f32
    %21 = vector.broadcast %cst_16 : f32 to vector<4x8xf32>
    %22 = arith.mulf %20, %21 : vector<4x8xf32>
    %cst_17 = arith.constant dense<0xFF800000> : vector<4xf32>
    %23 = vector.multi_reduction <maximumf>, %22, %cst_17 [1] : vector<4x8xf32> to vector<4xf32>
    %24 = vector.shape_cast %23 : vector<4xf32> to vector<4x1xf32>
    %25 = vector.broadcast %24 : vector<4x1xf32> to vector<4x8xf32>
    %26 = arith.subf %22, %25 : vector<4x8xf32>
    %27 = math.exp %26 : vector<4x8xf32>
    %cst_18 = arith.constant dense<0.000000e+00> : vector<4xf32>
    %28 = vector.multi_reduction <add>, %27, %cst_18 [1] : vector<4x8xf32> to vector<4xf32>
    %29 = vector.shape_cast %28 : vector<4xf32> to vector<4x1xf32>
    %cst_19 = arith.constant dense<0.000000e+00> : vector<4x32xf32>
    %30 = tpu.matmul %27, %19, %cst_19 {dimension_numbers = #tpu.dot_dimension_numbers<[1], [0], [0], [1], [0, 0, 1, 1], [], []>} : vector<4x8xf32>, vector<8x32xf32>, vector<4x32xf32> -> vector<4x32xf32>
    %31 = tpu.reciprocal %29 {approx = true} : vector<4x1xf32> -> vector<4x1xf32>
    %32 = vector.broadcast %31 : vector<4x1xf32> to vector<4x32xf32>
    %33 = arith.mulf %30, %32 : vector<4x32xf32>
    %c0_20 = arith.constant 0 : index
    %c0_21 = arith.constant 0 : index
    %34 = vector.load %arg8[%c0_20, %c0_21] : memref<128x128xf32, #tpu.memory_space<vmem>>, vector<32x128xf32>
    %cst_22 = arith.constant dense<0.000000e+00> : vector<4x128xf32>
    %35 = tpu.matmul %33, %34, %cst_22 {dimension_numbers = #tpu.dot_dimension_numbers<[1], [0], [0], [1], [0, 0, 1, 1], [], []>} : vector<4x32xf32>, vector<32x128xf32>, vector<4x128xf32> -> vector<4x128xf32>
    %36 = arith.addf %16, %35 : vector<4x128xf32>
    %37 = vector.extract_strided_slice %8 {offsets = [0, 32], sizes = [4, 32], strides = [1, 1]} : vector<4x128xf32> to vector<4x32xf32>
    %38 = vector.extract_strided_slice %14 {offsets = [0, 32], sizes = [8, 32], strides = [1, 1]} : vector<8x128xf32> to vector<8x32xf32>
    %39 = vector.extract_strided_slice %15 {offsets = [0, 32], sizes = [8, 32], strides = [1, 1]} : vector<8x128xf32> to vector<8x32xf32>
    %cst_23 = arith.constant dense<0.000000e+00> : vector<4x8xf32>
    %40 = tpu.matmul %37, %38, %cst_23 {dimension_numbers = #tpu.dot_dimension_numbers<[1], [1], [0], [0], [0, 0, 1, 0], [], []>} : vector<4x32xf32>, vector<8x32xf32>, vector<4x8xf32> -> vector<4x8xf32>
    %cst_24 = arith.constant 0.176776692 : f32
    %41 = vector.broadcast %cst_24 : f32 to vector<4x8xf32>
    %42 = arith.mulf %40, %41 : vector<4x8xf32>
    %cst_25 = arith.constant dense<0xFF800000> : vector<4xf32>
    %43 = vector.multi_reduction <maximumf>, %42, %cst_25 [1] : vector<4x8xf32> to vector<4xf32>
    %44 = vector.shape_cast %43 : vector<4xf32> to vector<4x1xf32>
    %45 = vector.broadcast %44 : vector<4x1xf32> to vector<4x8xf32>
    %46 = arith.subf %42, %45 : vector<4x8xf32>
    %47 = math.exp %46 : vector<4x8xf32>
    %cst_26 = arith.constant dense<0.000000e+00> : vector<4xf32>
    %48 = vector.multi_reduction <add>, %47, %cst_26 [1] : vector<4x8xf32> to vector<4xf32>
    %49 = vector.shape_cast %48 : vector<4xf32> to vector<4x1xf32>
    %cst_27 = arith.constant dense<0.000000e+00> : vector<4x32xf32>
    %50 = tpu.matmul %47, %39, %cst_27 {dimension_numbers = #tpu.dot_dimension_numbers<[1], [0], [0], [1], [0, 0, 1, 1], [], []>} : vector<4x8xf32>, vector<8x32xf32>, vector<4x32xf32> -> vector<4x32xf32>
    %51 = tpu.reciprocal %49 {approx = true} : vector<4x1xf32> -> vector<4x1xf32>
    %52 = vector.broadcast %51 : vector<4x1xf32> to vector<4x32xf32>
    %53 = arith.mulf %50, %52 : vector<4x32xf32>
    %c32 = arith.constant 32 : index
    %c0_28 = arith.constant 0 : index
    %54 = vector.load %arg8[%c32, %c0_28] : memref<128x128xf32, #tpu.memory_space<vmem>>, vector<32x128xf32>
    %cst_29 = arith.constant dense<0.000000e+00> : vector<4x128xf32>
    %55 = tpu.matmul %53, %54, %cst_29 {dimension_numbers = #tpu.dot_dimension_numbers<[1], [0], [0], [1], [0, 0, 1, 1], [], []>} : vector<4x32xf32>, vector<32x128xf32>, vector<4x128xf32> -> vector<4x128xf32>
    %56 = arith.addf %36, %55 : vector<4x128xf32>
    %57 = vector.extract_strided_slice %8 {offsets = [0, 64], sizes = [4, 32], strides = [1, 1]} : vector<4x128xf32> to vector<4x32xf32>
    %58 = vector.extract_strided_slice %14 {offsets = [0, 64], sizes = [8, 32], strides = [1, 1]} : vector<8x128xf32> to vector<8x32xf32>
    %59 = vector.extract_strided_slice %15 {offsets = [0, 64], sizes = [8, 32], strides = [1, 1]} : vector<8x128xf32> to vector<8x32xf32>
    %cst_30 = arith.constant dense<0.000000e+00> : vector<4x8xf32>
    %60 = tpu.matmul %57, %58, %cst_30 {dimension_numbers = #tpu.dot_dimension_numbers<[1], [1], [0], [0], [0, 0, 1, 0], [], []>} : vector<4x32xf32>, vector<8x32xf32>, vector<4x8xf32> -> vector<4x8xf32>
    %cst_31 = arith.constant 0.176776692 : f32
    %61 = vector.broadcast %cst_31 : f32 to vector<4x8xf32>
    %62 = arith.mulf %60, %61 : vector<4x8xf32>
    %cst_32 = arith.constant dense<0xFF800000> : vector<4xf32>
    %63 = vector.multi_reduction <maximumf>, %62, %cst_32 [1] : vector<4x8xf32> to vector<4xf32>
    %64 = vector.shape_cast %63 : vector<4xf32> to vector<4x1xf32>
    %65 = vector.broadcast %64 : vector<4x1xf32> to vector<4x8xf32>
    %66 = arith.subf %62, %65 : vector<4x8xf32>
    %67 = math.exp %66 : vector<4x8xf32>
    %cst_33 = arith.constant dense<0.000000e+00> : vector<4xf32>
    %68 = vector.multi_reduction <add>, %67, %cst_33 [1] : vector<4x8xf32> to vector<4xf32>
    %69 = vector.shape_cast %68 : vector<4xf32> to vector<4x1xf32>
    %cst_34 = arith.constant dense<0.000000e+00> : vector<4x32xf32>
    %70 = tpu.matmul %67, %59, %cst_34 {dimension_numbers = #tpu.dot_dimension_numbers<[1], [0], [0], [1], [0, 0, 1, 1], [], []>} : vector<4x8xf32>, vector<8x32xf32>, vector<4x32xf32> -> vector<4x32xf32>
    %71 = tpu.reciprocal %69 {approx = true} : vector<4x1xf32> -> vector<4x1xf32>
    %72 = vector.broadcast %71 : vector<4x1xf32> to vector<4x32xf32>
    %73 = arith.mulf %70, %72 : vector<4x32xf32>
    %c64 = arith.constant 64 : index
    %c0_35 = arith.constant 0 : index
    %74 = vector.load %arg8[%c64, %c0_35] : memref<128x128xf32, #tpu.memory_space<vmem>>, vector<32x128xf32>
    %cst_36 = arith.constant dense<0.000000e+00> : vector<4x128xf32>
    %75 = tpu.matmul %73, %74, %cst_36 {dimension_numbers = #tpu.dot_dimension_numbers<[1], [0], [0], [1], [0, 0, 1, 1], [], []>} : vector<4x32xf32>, vector<32x128xf32>, vector<4x128xf32> -> vector<4x128xf32>
    %76 = arith.addf %56, %75 : vector<4x128xf32>
    %77 = vector.extract_strided_slice %8 {offsets = [0, 96], sizes = [4, 32], strides = [1, 1]} : vector<4x128xf32> to vector<4x32xf32>
    %78 = vector.extract_strided_slice %14 {offsets = [0, 96], sizes = [8, 32], strides = [1, 1]} : vector<8x128xf32> to vector<8x32xf32>
    %79 = vector.extract_strided_slice %15 {offsets = [0, 96], sizes = [8, 32], strides = [1, 1]} : vector<8x128xf32> to vector<8x32xf32>
    %cst_37 = arith.constant dense<0.000000e+00> : vector<4x8xf32>
    %80 = tpu.matmul %77, %78, %cst_37 {dimension_numbers = #tpu.dot_dimension_numbers<[1], [1], [0], [0], [0, 0, 1, 0], [], []>} : vector<4x32xf32>, vector<8x32xf32>, vector<4x8xf32> -> vector<4x8xf32>
    %cst_38 = arith.constant 0.176776692 : f32
    %81 = vector.broadcast %cst_38 : f32 to vector<4x8xf32>
    %82 = arith.mulf %80, %81 : vector<4x8xf32>
    %cst_39 = arith.constant dense<0xFF800000> : vector<4xf32>
    %83 = vector.multi_reduction <maximumf>, %82, %cst_39 [1] : vector<4x8xf32> to vector<4xf32>
    %84 = vector.shape_cast %83 : vector<4xf32> to vector<4x1xf32>
    %85 = vector.broadcast %84 : vector<4x1xf32> to vector<4x8xf32>
    %86 = arith.subf %82, %85 : vector<4x8xf32>
    %87 = math.exp %86 : vector<4x8xf32>
    %cst_40 = arith.constant dense<0.000000e+00> : vector<4xf32>
    %88 = vector.multi_reduction <add>, %87, %cst_40 [1] : vector<4x8xf32> to vector<4xf32>
    %89 = vector.shape_cast %88 : vector<4xf32> to vector<4x1xf32>
    %cst_41 = arith.constant dense<0.000000e+00> : vector<4x32xf32>
    %90 = tpu.matmul %87, %79, %cst_41 {dimension_numbers = #tpu.dot_dimension_numbers<[1], [0], [0], [1], [0, 0, 1, 1], [], []>} : vector<4x8xf32>, vector<8x32xf32>, vector<4x32xf32> -> vector<4x32xf32>
    %91 = tpu.reciprocal %89 {approx = true} : vector<4x1xf32> -> vector<4x1xf32>
    %92 = vector.broadcast %91 : vector<4x1xf32> to vector<4x32xf32>
    %93 = arith.mulf %90, %92 : vector<4x32xf32>
    %c96 = arith.constant 96 : index
    %c0_42 = arith.constant 0 : index
    %94 = vector.load %arg8[%c96, %c0_42] : memref<128x128xf32, #tpu.memory_space<vmem>>, vector<32x128xf32>
    %cst_43 = arith.constant dense<0.000000e+00> : vector<4x128xf32>
    %95 = tpu.matmul %93, %94, %cst_43 {dimension_numbers = #tpu.dot_dimension_numbers<[1], [0], [0], [1], [0, 0, 1, 1], [], []>} : vector<4x32xf32>, vector<32x128xf32>, vector<4x128xf32> -> vector<4x128xf32>
    %96 = arith.addf %76, %95 : vector<4x128xf32>
    %c0_44 = arith.constant 0 : index
    %c0_45 = arith.constant 0 : index
    %97 = vector.load %arg9[%c0_44, %c0_45] : memref<1x128xf32, #tpu.memory_space<vmem>>, vector<1x128xf32>
    %98 = vector.broadcast %97 : vector<1x128xf32> to vector<4x128xf32>
    %99 = arith.addf %96, %98 : vector<4x128xf32>
    %c0_46 = arith.constant 0 : index
    %c0_47 = arith.constant 0 : index
    %c0_48 = arith.constant 0 : index
    %100 = vector.load %arg3[%c0_46, %c0_47, %c0_48] : memref<1x4x128xf32, #tpu.memory_space<vmem>>, vector<1x4x128xf32>
    %101 = vector.shape_cast %100 : vector<1x4x128xf32> to vector<4x128xf32>
    %102 = arith.addf %99, %101 : vector<4x128xf32>
    %cst_49 = arith.constant dense<0.000000e+00> : vector<4xf32>
    %103 = vector.multi_reduction <add>, %102, %cst_49 [1] : vector<4x128xf32> to vector<4xf32>
    %104 = vector.shape_cast %103 : vector<4xf32> to vector<4x1xf32>
    %cst_50 = arith.constant 7.812500e-03 : f32
    %105 = vector.broadcast %cst_50 : f32 to vector<4x1xf32>
    %106 = arith.mulf %104, %105 : vector<4x1xf32>
    %107 = vector.broadcast %106 : vector<4x1xf32> to vector<4x128xf32>
    %108 = arith.subf %102, %107 : vector<4x128xf32>
    %109 = arith.mulf %108, %108 : vector<4x128xf32>
    %cst_51 = arith.constant dense<0.000000e+00> : vector<4xf32>
    %110 = vector.multi_reduction <add>, %109, %cst_51 [1] : vector<4x128xf32> to vector<4xf32>
    %111 = vector.shape_cast %110 : vector<4xf32> to vector<4x1xf32>
    %cst_52 = arith.constant 7.812500e-03 : f32
    %112 = vector.broadcast %cst_52 : f32 to vector<4x1xf32>
    %113 = arith.mulf %111, %112 : vector<4x1xf32>
    %cst_53 = arith.constant 9.99999974E-6 : f32
    %114 = vector.broadcast %cst_53 : f32 to vector<4x1xf32>
    %115 = arith.addf %113, %114 : vector<4x1xf32>
    %116 = math.rsqrt %115 : vector<4x1xf32>
    %117 = vector.broadcast %116 : vector<4x1xf32> to vector<4x128xf32>
    %118 = arith.mulf %108, %117 : vector<4x128xf32>
    %c0_54 = arith.constant 0 : index
    %c0_55 = arith.constant 0 : index
    %119 = vector.load %arg10[%c0_54, %c0_55] : memref<1x128xf32, #tpu.memory_space<vmem>>, vector<1x128xf32>
    %120 = vector.broadcast %119 : vector<1x128xf32> to vector<4x128xf32>
    %121 = arith.mulf %118, %120 : vector<4x128xf32>
    %c0_56 = arith.constant 0 : index
    %c0_57 = arith.constant 0 : index
    %122 = vector.load %arg11[%c0_56, %c0_57] : memref<1x128xf32, #tpu.memory_space<vmem>>, vector<1x128xf32>
    %123 = vector.broadcast %122 : vector<1x128xf32> to vector<4x128xf32>
    %124 = arith.addf %121, %123 : vector<4x128xf32>
    %c0_58 = arith.constant 0 : index
    %c0_59 = arith.constant 0 : index
    %c0_60 = arith.constant 0 : index
    %125 = vector.load %arg12[%c0_58, %c0_59, %c0_60] : memref<1x4x128xf32, #tpu.memory_space<vmem>>, vector<1x4x128xf32>
    %126 = vector.shape_cast %125 : vector<1x4x128xf32> to vector<4x128xf32>
    %127 = vector.shape_cast %124 : vector<4x128xf32> to vector<1x4x128xf32>
    tpu.vector_store %arg12[%c0_58, %c0_59, %c0_60], %127 {strides = array<i32>} : memref<1x4x128xf32, #tpu.memory_space<vmem>>, vector<1x4x128xf32>,
    return
  }
  func.func @transform_0(%arg0: i32) -> (i32, i32, i32) {
    %c0_i32 = arith.constant 0 : i32
    %c0_i32_0 = arith.constant 0 : i32
    %c0_i32_1 = arith.constant 0 : i32
    return %arg0, %c0_i32, %c0_i32_0 : i32, i32, i32
  }
  func.func @transform_1(%arg0: i32) -> (i32, i32, i32) {
    %c0_i32 = arith.constant 0 : i32
    %c0_i32_0 = arith.constant 0 : i32
    %c0_i32_1 = arith.constant 0 : i32
    return %arg0, %c0_i32, %c0_i32_0 : i32, i32, i32
  }
  func.func @transform_2(%arg0: i32) -> (i32, i32, i32) {
    %c0_i32 = arith.constant 0 : i32
    %c0_i32_0 = arith.constant 0 : i32
    %c0_i32_1 = arith.constant 0 : i32
    return %arg0, %c0_i32, %c0_i32_0 : i32, i32, i32
  }
  func.func @transform_3(%arg0: i32) -> (i32, i32) {
    %c0_i32 = arith.constant 0 : i32
    %c0_i32_0 = arith.constant 0 : i32
    %c0_i32_1 = arith.constant 0 : i32
    return %c0_i32, %c0_i32_0 : i32, i32
  }
  func.func @transform_4(%arg0: i32) -> (i32, i32) {
    %c0_i32 = arith.constant 0 : i32
    %c0_i32_0 = arith.constant 0 : i32
    %c0_i32_1 = arith.constant 0 : i32
    return %c0_i32, %c0_i32_0 : i32, i32
  }
  func.func @transform_5(%arg0: i32) -> (i32, i32) {
    %c0_i32 = arith.constant 0 : i32
    %c0_i32_0 = arith.constant 0 : i32
    %c0_i32_1 = arith.constant 0 : i32
    return %c0_i32, %c0_i32_0 : i32, i32
  }
  func.func @transform_6(%arg0: i32) -> (i32, i32) {
    %c0_i32 = arith.constant 0 : i32
    %c0_i32_0 = arith.constant 0 : i32
    %c0_i32_1 = arith.constant 0 : i32
    return %c0_i32, %c0_i32_0 : i32, i32
  }
  func.func @transform_7(%arg0: i32) -> (i32, i32) {
    %c0_i32 = arith.constant 0 : i32
    %c0_i32_0 = arith.constant 0 : i32
    %c0_i32_1 = arith.constant 0 : i32
    return %c0_i32, %c0_i32_0 : i32, i32
  }
  func.func @transform_8(%arg0: i32) -> (i32, i32) {
    %c0_i32 = arith.constant 0 : i32
    %c0_i32_0 = arith.constant 0 : i32
    %c0_i32_1 = arith.constant 0 : i32
    return %c0_i32, %c0_i32_0 : i32, i32
  }
  func.func @transform_9(%arg0: i32) -> (i32, i32) {
    %c0_i32 = arith.constant 0 : i32
    %c0_i32_0 = arith.constant 0 : i32
    %c0_i32_1 = arith.constant 0 : i32
    return %c0_i32, %c0_i32_0 : i32, i32
  }
  func.func @transform_10(%arg0: i32) -> (i32, i32) {
    %c0_i32 = arith.constant 0 : i32
    %c0_i32_0 = arith.constant 0 : i32
    %c0_i32_1 = arith.constant 0 : i32
    return %c0_i32, %c0_i32_0 : i32, i32
  }
  func.func @transform_11(%arg0: i32) -> (i32, i32, i32) {
    %c0_i32 = arith.constant 0 : i32
    %c0_i32_0 = arith.constant 0 : i32
    %c0_i32_1 = arith.constant 0 : i32
    return %arg0, %c0_i32, %c0_i32_0 : i32, i32, i32
  }
}

</mosaic_0001>

<llo_original>
// kernel: tpu_custom_call.1
$region0: #{tpu_custom_call.1}
  #allocation0 [shape = 'u32[]', space=smem, size = 0x4, offset = 0x4, fixed_abs, tag = 'smem constant byte address 0x4 - core index']
  #allocation1 [shape = 'u32[144,128]{1,0:T(1,128)}', space=vmem, size = 0x12000, scoped, tag = 'internal scratch']
  %s0 = inlined_call_operand.hbm [shape: f32[2,4,128], index: 0, kind: input, shape index: {}]
  %s1 = inlined_call_operand.hbm [shape: f32[2,8,128], index: 1, kind: input, shape index: {}]
  %s2 = inlined_call_operand.hbm [shape: f32[2,4,128], index: 2, kind: input, shape index: {}]
  %s3 = inlined_call_operand.hbm [shape: f32[128,128], index: 3, kind: input, shape index: {}]
  %s4 = inlined_call_operand.vmem [shape: f32[1,128], index: 4, kind: input, shape index: {}]
  %s5 = inlined_call_operand.hbm [shape: f32[128,256], index: 5, kind: input, shape index: {}]
  %s6 = inlined_call_operand.vmem [shape: f32[1,256], index: 6, kind: input, shape index: {}]
  %s7 = inlined_call_operand.hbm [shape: f32[128,128], index: 7, kind: input, shape index: {}]
  %s8 = inlined_call_operand.vmem [shape: f32[1,128], index: 8, kind: input, shape index: {}]
  %s9 = inlined_call_operand.vmem [shape: f32[1,128], index: 9, kind: input, shape index: {}]
  %s10 = inlined_call_operand.vmem [shape: f32[1,128], index: 10, kind: input, shape index: {}]
  %s11 = inlined_call_operand.hbm [shape: f32[2,4,128], index: 11, kind: output, shape index: {}]
  %s12 = sld [smem:[#allocation0]]
  $region101: #{tpu_custom_call.1} parent=0
    _
  %s14 = ssub.s32 1, %s12
  %s15 = scalar_select 0, %s14, %s12
  $region1: #{tpu_custom_call.1} parent=0
    #allocation2 [shape = 'u8[4096]{0}', space=vmem, size = 0x1000, scoped, tag = 'input window, operand 0']
    #allocation3 [shape = 's32[2]{0}', space=sflag, size = 0x8, scoped, tag = 'scoped memory for tpu_custom_call.1']
    #allocation4 [shape = 's32[2]{0}', space=sflag, size = 0x8, scoped, tag = 'scoped memory for tpu_custom_call.1']
    #allocation5 [shape = 'u8[8192]{0}', space=vmem, size = 0x2000, scoped, tag = 'input window, operand 1']
    #allocation6 [shape = 's32[2]{0}', space=sflag, size = 0x8, scoped, tag = 'scoped memory for tpu_custom_call.1']
    #allocation7 [shape = 'u8[4096]{0}', space=vmem, size = 0x1000, scoped, tag = 'input window, operand 2']
    #allocation8 [shape = 'u8[65536]{0}', space=vmem, size = 0x10000, scoped, tag = 'input window, operand 3, single buffered']
    #allocation9 [shape = 's32[1]{0}', space=sflag, size = 0x4, scoped, tag = 'scoped memory for tpu_custom_call.1']
    #allocation10 [shape = 'u8[131072]{0}', space=vmem, size = 0x20000, scoped, tag = 'input window, operand 5, single buffered']
    #allocation11 [shape = 'u8[65536]{0}', space=vmem, size = 0x10000, scoped, tag = 'input window, operand 7, single buffered']
    #allocation12 [shape = 's32[1]{0}', space=sflag, size = 0x4, scoped, tag = 'scoped memory for tpu_custom_call.1']
    #allocation13 [shape = 'u8[4096]{0}', space=vmem, size = 0x1000, scoped, tag = 'output window, operand 0']
    %16 = vsyncpa [#allocation3], 0
    %s17 = scalar_lea.sflag [#allocation3], 1
    %18 = vsyncpa %s17, 0
    %19 = vsyncpa [#allocation6], 0
    %s20 = scalar_lea.sflag [#allocation6], 1
    %21 = vsyncpa %s20, 0
    %22 = vsyncpa [#allocation9], 0
    %23 = vsyncpa [#allocation12], 0
    %24 = vsyncpa [#allocation4], 0
    %s25 = scalar_lea.sflag [#allocation4], 1
    %26 = vsyncpa %s25, 0
    loop: start=0, step=1, limit=4
    $region2: #{tpu_custom_call.1} parent=1 // loop_pre_header
      _
    $region3: #{tpu_custom_call.1} parent=1 // loop_header
      %s28 = sphi 0, %s32
      %p29 = scmp.ge.s32.totalorder %s28, 4
      %s38 = sphi 0, %s40
      %s41 = sphi 0, %s38
      %s42 = sphi 0, %s41
      %s58 = sphi 0, %s42
      %s64 = sphi 0, %s66
      %s67 = sphi 0, %s64
      %s68 = sphi 0, %s67
      %s84 = sphi 0, %s68
      %s90 = sphi 0, %s92
      %s93 = sphi 0, %s90
      %s94 = sphi 0, %s93
      %s110 = sphi 0, %s94
      %s114 = sphi 0, %s114
      %s116 = sphi 0, %s114
      %s117 = sphi 0, %s116
      %s131 = sphi 0, %s117
      %s135 = sphi 0, %s135
      %s137 = sphi 0, %s135
      %s138 = sphi 0, %s137
      %s152 = sphi 0, %s138
      %s156 = sphi 0, %s156
      %s158 = sphi 0, %s156
      %s159 = sphi 0, %s158
      %s173 = sphi 0, %s159
      %s177 = sphi 0, %s177
      %s179 = sphi 0, %s177
      %s180 = sphi 0, %s179
      %s194 = sphi 0, %s180
      %s198 = sphi 0, %s198
      %s200 = sphi 0, %s198
      %s201 = sphi 0, %s200
      %s215 = sphi 0, %s201
      %s219 = sphi 0, %s219
      %s221 = sphi 0, %s219
      %s222 = sphi 0, %s221
      %s236 = sphi 0, %s222
      %s240 = sphi 0, %s240
      %s242 = sphi 0, %s240
      %s243 = sphi 0, %s242
      %s257 = sphi 0, %s243
      %s261 = sphi 0, %s261
      %s263 = sphi 0, %s261
      %s264 = sphi 0, %s263
      %s278 = sphi 0, %s264
      %s284 = sphi 0, %s286
      %s287 = sphi 0, %s284
      %s288 = sphi 0, %s287
      %s304 = sphi 0, %s288
    $region4: #{tpu_custom_call.1} parent=1 // loop_header_branch
      %31 = sbr.rel (%p29) target = $region8
    $region5: #{tpu_custom_call.1} parent=1 // loop_body
      %s33 = ssub.s32 %s28, 1
      %s34 = ssub.s32 %s28, 2
      %s35 = sadd.s32 %s28, 1
      %s36 = ssub.s32 %s28, %s35
      %p37 = scmp.eq.s32.totalorder %s36, 0
      %s39 = sadd.s32 %s38, 1
      %s40 = scalar_select %p37, %s38, %s39
      %p43 = pneg %p37
      %p44 = scmp.eq.s32.totalorder %s28, 1
      %p45 = por %p43, %p44
      %p46 = scmp.ne.s32.totalorder %s38, %s41
      %p47 = scmp.eq.s32.totalorder %s28, 0
      %p48 = por %p46, %p47
      %p49 = scmp.ne.s32.totalorder %s38, %s41
      %p50 = scmp.eq.s32.totalorder %s33, 1
      %p51 = por %p49, %p50
      %p52 = scmp.ne.s32.totalorder %s41, %s42
      %p53 = scmp.eq.s32.totalorder %s33, 0
      %p54 = por %p52, %p53
      %p55 = scmp.ne.s32.totalorder %s41, %s42
      %p56 = scmp.eq.s32.totalorder %s34, 1
      %p57 = por %p55, %p56
      %p59 = scmp.ne.s32.totalorder %s42, %s58
      %p60 = scmp.eq.s32.totalorder %s34, 0
      %p61 = por %p59, %p60
      %s62 = ssub.s32 %s28, %s35
      %p63 = scmp.eq.s32.totalorder %s62, 0
      %s65 = sadd.s32 %s64, 1
      %s66 = scalar_select %p63, %s64, %s65
      %p69 = pneg %p63
      %p70 = scmp.eq.s32.totalorder %s28, 1
      %p71 = por %p69, %p70
      %p72 = scmp.ne.s32.totalorder %s64, %s67
      %p73 = scmp.eq.s32.totalorder %s28, 0
      %p74 = por %p72, %p73
      %p75 = scmp.ne.s32.totalorder %s64, %s67
      %p76 = scmp.eq.s32.totalorder %s33, 1
      %p77 = por %p75, %p76
      %p78 = scmp.ne.s32.totalorder %s67, %s68
      %p79 = scmp.eq.s32.totalorder %s33, 0
      %p80 = por %p78, %p79
      %p81 = scmp.ne.s32.totalorder %s67, %s68
      %p82 = scmp.eq.s32.totalorder %s34, 1
      %p83 = por %p81, %p82
      %p85 = scmp.ne.s32.totalorder %s68, %s84
      %p86 = scmp.eq.s32.totalorder %s34, 0
      %p87 = por %p85, %p86
      %s88 = ssub.s32 %s28, %s35
      %p89 = scmp.eq.s32.totalorder %s88, 0
      %s91 = sadd.s32 %s90, 1
      %s92 = scalar_select %p89, %s90, %s91
      %p95 = pneg %p89
      %p96 = scmp.eq.s32.totalorder %s28, 1
      %p97 = por %p95, %p96
      %p98 = scmp.ne.s32.totalorder %s90, %s93
      %p99 = scmp.eq.s32.totalorder %s28, 0
      %p100 = por %p98, %p99
      %p101 = scmp.ne.s32.totalorder %s90, %s93
      %p102 = scmp.eq.s32.totalorder %s33, 1
      %p103 = por %p101, %p102
      %p104 = scmp.ne.s32.totalorder %s93, %s94
      %p105 = scmp.eq.s32.totalorder %s33, 0
      %p106 = por %p104, %p105
      %p107 = scmp.ne.s32.totalorder %s93, %s94
      %p108 = scmp.eq.s32.totalorder %s34, 1
      %p109 = por %p107, %p108
      %p111 = scmp.ne.s32.totalorder %s94, %s110
      %p112 = scmp.eq.s32.totalorder %s34, 0
      %p113 = por %p111, %p112
      %s115 = sadd.s32 %s114, 1
      %p118 = scmp.eq.s32.totalorder %s28, 1
      %p119 = scmp.ne.s32.totalorder %s114, %s116
      %p120 = scmp.eq.s32.totalorder %s28, 0
      %p121 = por %p119, %p120
      %p122 = scmp.ne.s32.totalorder %s114, %s116
      %p123 = scmp.eq.s32.totalorder %s33, 1
      %p124 = por %p122, %p123
      %p125 = scmp.ne.s32.totalorder %s116, %s117
      %p126 = scmp.eq.s32.totalorder %s33, 0
      %p127 = por %p125, %p126
      %p128 = scmp.ne.s32.totalorder %s116, %s117
      %p129 = scmp.eq.s32.totalorder %s34, 1
      %p130 = por %p128, %p129
      %p132 = scmp.ne.s32.totalorder %s117, %s131
      %p133 = scmp.eq.s32.totalorder %s34, 0
      %p134 = por %p132, %p133
      %s136 = sadd.s32 %s135, 1
      %p139 = scmp.eq.s32.totalorder %s28, 1
      %p140 = scmp.ne.s32.totalorder %s135, %s137
      %p141 = scmp.eq.s32.totalorder %s28, 0
      %p142 = por %p140, %p141
      %p143 = scmp.ne.s32.totalorder %s135, %s137
      %p144 = scmp.eq.s32.totalorder %s33, 1
      %p145 = por %p143, %p144
      %p146 = scmp.ne.s32.totalorder %s137, %s138
      %p147 = scmp.eq.s32.totalorder %s33, 0
      %p148 = por %p146, %p147
      %p149 = scmp.ne.s32.totalorder %s137, %s138
      %p150 = scmp.eq.s32.totalorder %s34, 1
      %p151 = por %p149, %p150
      %p153 = scmp.ne.s32.totalorder %s138, %s152
      %p154 = scmp.eq.s32.totalorder %s34, 0
      %p155 = por %p153, %p154
      %s157 = sadd.s32 %s156, 1
      %p160 = scmp.eq.s32.totalorder %s28, 1
      %p161 = scmp.ne.s32.totalorder %s156, %s158
      %p162 = scmp.eq.s32.totalorder %s28, 0
      %p163 = por %p161, %p162
      %p164 = scmp.ne.s32.totalorder %s156, %s158
      %p165 = scmp.eq.s32.totalorder %s33, 1
      %p166 = por %p164, %p165
      %p167 = scmp.ne.s32.totalorder %s158, %s159
      %p168 = scmp.eq.s32.totalorder %s33, 0
      %p169 = por %p167, %p168
      %p170 = scmp.ne.s32.totalorder %s158, %s159
      %p171 = scmp.eq.s32.totalorder %s34, 1
      %p172 = por %p170, %p171
      %p174 = scmp.ne.s32.totalorder %s159, %s173
      %p175 = scmp.eq.s32.totalorder %s34, 0
      %p176 = por %p174, %p175
      %s178 = sadd.s32 %s177, 1
      %p181 = scmp.eq.s32.totalorder %s28, 1
      %p182 = scmp.ne.s32.totalorder %s177, %s179
      %p183 = scmp.eq.s32.totalorder %s28, 0
      %p184 = por %p182, %p183
      %p185 = scmp.ne.s32.totalorder %s177, %s179
      %p186 = scmp.eq.s32.totalorder %s33, 1
      %p187 = por %p185, %p186
      %p188 = scmp.ne.s32.totalorder %s179, %s180
      %p189 = scmp.eq.s32.totalorder %s33, 0
      %p190 = por %p188, %p189
      %p191 = scmp.ne.s32.totalorder %s179, %s180
      %p192 = scmp.eq.s32.totalorder %s34, 1
      %p193 = por %p191, %p192
      %p195 = scmp.ne.s32.totalorder %s180, %s194
      %p196 = scmp.eq.s32.totalorder %s34, 0
      %p197 = por %p195, %p196
      %s199 = sadd.s32 %s198, 1
      %p202 = scmp.eq.s32.totalorder %s28, 1
      %p203 = scmp.ne.s32.totalorder %s198, %s200
      %p204 = scmp.eq.s32.totalorder %s28, 0
      %p205 = por %p203, %p204
      %p206 = scmp.ne.s32.totalorder %s198, %s200
      %p207 = scmp.eq.s32.totalorder %s33, 1
      %p208 = por %p206, %p207
      %p209 = scmp.ne.s32.totalorder %s200, %s201
      %p210 = scmp.eq.s32.totalorder %s33, 0
      %p211 = por %p209, %p210
      %p212 = scmp.ne.s32.totalorder %s200, %s201
      %p213 = scmp.eq.s32.totalorder %s34, 1
      %p214 = por %p212, %p213
      %p216 = scmp.ne.s32.totalorder %s201, %s215
      %p217 = scmp.eq.s32.totalorder %s34, 0
      %p218 = por %p216, %p217
      %s220 = sadd.s32 %s219, 1
      %p223 = scmp.eq.s32.totalorder %s28, 1
      %p224 = scmp.ne.s32.totalorder %s219, %s221
      %p225 = scmp.eq.s32.totalorder %s28, 0
      %p226 = por %p224, %p225
      %p227 = scmp.ne.s32.totalorder %s219, %s221
      %p228 = scmp.eq.s32.totalorder %s33, 1
      %p229 = por %p227, %p228
      %p230 = scmp.ne.s32.totalorder %s221, %s222
      %p231 = scmp.eq.s32.totalorder %s33, 0
      %p232 = por %p230, %p231
      %p233 = scmp.ne.s32.totalorder %s221, %s222
      %p234 = scmp.eq.s32.totalorder %s34, 1
      %p235 = por %p233, %p234
      %p237 = scmp.ne.s32.totalorder %s222, %s236
      %p238 = scmp.eq.s32.totalorder %s34, 0
      %p239 = por %p237, %p238
      %s241 = sadd.s32 %s240, 1
      %p244 = scmp.eq.s32.totalorder %s28, 1
      %p245 = scmp.ne.s32.totalorder %s240, %s242
      %p246 = scmp.eq.s32.totalorder %s28, 0
      %p247 = por %p245, %p246
      %p248 = scmp.ne.s32.totalorder %s240, %s242
      %p249 = scmp.eq.s32.totalorder %s33, 1
      %p250 = por %p248, %p249
      %p251 = scmp.ne.s32.totalorder %s242, %s243
      %p252 = scmp.eq.s32.totalorder %s33, 0
      %p253 = por %p251, %p252
      %p254 = scmp.ne.s32.totalorder %s242, %s243
      %p255 = scmp.eq.s32.totalorder %s34, 1
      %p256 = por %p254, %p255
      %p258 = scmp.ne.s32.totalorder %s243, %s257
      %p259 = scmp.eq.s32.totalorder %s34, 0
      %p260 = por %p258, %p259
      %s262 = sadd.s32 %s261, 1
      %p265 = scmp.eq.s32.totalorder %s28, 1
      %p266 = scmp.ne.s32.totalorder %s261, %s263
      %p267 = scmp.eq.s32.totalorder %s28, 0
      %p268 = por %p266, %p267
      %p269 = scmp.ne.s32.totalorder %s261, %s263
      %p270 = scmp.eq.s32.totalorder %s33, 1
      %p271 = por %p269, %p270
      %p272 = scmp.ne.s32.totalorder %s263, %s264
      %p273 = scmp.eq.s32.totalorder %s33, 0
      %p274 = por %p272, %p273
      %p275 = scmp.ne.s32.totalorder %s263, %s264
      %p276 = scmp.eq.s32.totalorder %s34, 1
      %p277 = por %p275, %p276
      %p279 = scmp.ne.s32.totalorder %s264, %s278
      %p280 = scmp.eq.s32.totalorder %s34, 0
      %p281 = por %p279, %p280
      %s282 = ssub.s32 %s28, %s35
      %p283 = scmp.eq.s32.totalorder %s282, 0
      %s285 = sadd.s32 %s284, 1
      %s286 = scalar_select %p283, %s284, %s285
      %p289 = pneg %p283
      %p290 = scmp.eq.s32.totalorder %s28, 1
      %p291 = por %p289, %p290
      %p292 = scmp.ne.s32.totalorder %s284, %s287
      %p293 = scmp.eq.s32.totalorder %s28, 0
      %p294 = por %p292, %p293
      %p295 = scmp.ne.s32.totalorder %s284, %s287
      %p296 = scmp.eq.s32.totalorder %s33, 1
      %p297 = por %p295, %p296
      %p298 = scmp.ne.s32.totalorder %s287, %s288
      %p299 = scmp.eq.s32.totalorder %s33, 0
      %p300 = por %p298, %p299
      %p301 = scmp.ne.s32.totalorder %s287, %s288
      %p302 = scmp.eq.s32.totalorder %s34, 1
      %p303 = por %p301, %p302
      %p305 = scmp.ne.s32.totalorder %s288, %s304
      %p306 = scmp.eq.s32.totalorder %s34, 0
      %p307 = por %p305, %p306
      %p308 = scmp.le.s32.totalorder 1, %s28
      %p309 = scmp.lt.s32.totalorder %s28, 3
      %p310 = pnand %p308, %p309
      %p311 = pneg %p310
      // Predicated region
      $region9: #{tpu_custom_call.1} parent=5 // pred_check
        _
      $region10: #{tpu_custom_call.1} parent=5 // pred_check_branch
        %313 = sbr.rel (%p310) target = $region12
      $region11: #{tpu_custom_call.1} parent=5 // pred_region
        %s314 = ssub.s32 %s28, 1
        // Predicated region
        $region13: #{tpu_custom_call.1} parent=11 // pred_check
          %p315 = pneg %p127
        $region14: #{tpu_custom_call.1} parent=11 // pred_check_branch
          %317 = sbr.rel (%p315) target = $region16
        $region15: #{tpu_custom_call.1} parent=11 // pred_region
          %s319 = ssub.s32 2048, 2048
          %320 = vsyncadd [#allocation9], %s319
          %s321 = sshll.u32 [#allocation8], 4
          %s322 = int_to_ptr.vmem [resolvable:$true] %s321
          %327 = dma.hbm_to_vmem [thread:$0]  %s3, 2048, %s322, [#allocation9], 128, 128, 8
        $region16: #{tpu_custom_call.1} parent=11 // pred_fallthru
          _
        // Predicated region
        $region17: #{tpu_custom_call.1} parent=11 // pred_check
          %p328 = pneg %p148
        $region18: #{tpu_custom_call.1} parent=11 // pred_check_branch
          %330 = sbr.rel (%p328) target = $region20
        $region19: #{tpu_custom_call.1} parent=11 // pred_region
          _
        $region20: #{tpu_custom_call.1} parent=11 // pred_fallthru
          _
        // Predicated region
        $region21: #{tpu_custom_call.1} parent=11 // pred_check
          %p331 = pneg %p169
        $region22: #{tpu_custom_call.1} parent=11 // pred_check_branch
          %333 = sbr.rel (%p331) target = $region24
        $region23: #{tpu_custom_call.1} parent=11 // pred_region
          %s335 = ssub.s32 4096, 4096
          %336 = vsyncadd [#allocation9], %s335
          %s337 = sshll.u32 [#allocation10], 4
          %s338 = int_to_ptr.vmem [resolvable:$true] %s337
          %343 = dma.hbm_to_vmem [thread:$0]  %s5, 4096, %s338, [#allocation9], 256, 256, 16
        $region24: #{tpu_custom_call.1} parent=11 // pred_fallthru
          _
        // Predicated region
        $region25: #{tpu_custom_call.1} parent=11 // pred_check
          %p344 = pneg %p190
        $region26: #{tpu_custom_call.1} parent=11 // pred_check_branch
          %346 = sbr.rel (%p344) target = $region28
        $region27: #{tpu_custom_call.1} parent=11 // pred_region
          _
        $region28: #{tpu_custom_call.1} parent=11 // pred_fallthru
          _
        // Predicated region
        $region29: #{tpu_custom_call.1} parent=11 // pred_check
          %p347 = pneg %p211
        $region30: #{tpu_custom_call.1} parent=11 // pred_check_branch
          %349 = sbr.rel (%p347) target = $region32
        $region31: #{tpu_custom_call.1} parent=11 // pred_region
          %s351 = ssub.s32 2048, 2048
          %352 = vsyncadd [#allocation12], %s351
          %s353 = sshll.u32 [#allocation11], 4
          %s354 = int_to_ptr.vmem [resolvable:$true] %s353
          %359 = dma.hbm_to_vmem [thread:$0]  %s7, 2048, %s354, [#allocation12], 128, 128, 8
        $region32: #{tpu_custom_call.1} parent=11 // pred_fallthru
          _
        // Predicated region
        $region33: #{tpu_custom_call.1} parent=11 // pred_check
          %p360 = pneg %p232
        $region34: #{tpu_custom_call.1} parent=11 // pred_check_branch
          %362 = sbr.rel (%p360) target = $region36
        $region35: #{tpu_custom_call.1} parent=11 // pred_region
          _
        $region36: #{tpu_custom_call.1} parent=11 // pred_fallthru
          _
        // Predicated region
        $region37: #{tpu_custom_call.1} parent=11 // pred_check
          %p363 = pneg %p253
        $region38: #{tpu_custom_call.1} parent=11 // pred_check_branch
          %365 = sbr.rel (%p363) target = $region40
        $region39: #{tpu_custom_call.1} parent=11 // pred_region
          _
        $region40: #{tpu_custom_call.1} parent=11 // pred_fallthru
          _
        // Predicated region
        $region41: #{tpu_custom_call.1} parent=11 // pred_check
          %p366 = pneg %p274
        $region42: #{tpu_custom_call.1} parent=11 // pred_check_branch
          %368 = sbr.rel (%p366) target = $region44
        $region43: #{tpu_custom_call.1} parent=11 // pred_region
          _
        $region44: #{tpu_custom_call.1} parent=11 // pred_fallthru
          _
      $region12: #{tpu_custom_call.1} parent=5 // pred_fallthru
        _
      %p369 = scmp.lt.s32.totalorder %s28, 2
      // Predicated region
      $region45: #{tpu_custom_call.1} parent=5 // pred_check
        %p370 = pneg %p369
      $region46: #{tpu_custom_call.1} parent=5 // pred_check_branch
        %372 = sbr.rel (%p370) target = $region48
      $region47: #{tpu_custom_call.1} parent=5 // pred_region
        // Predicated region
        $region49: #{tpu_custom_call.1} parent=47 // pred_check
          %p373 = pneg %p48
        $region50: #{tpu_custom_call.1} parent=47 // pred_check_branch
          %375 = sbr.rel (%p373) target = $region52
        $region51: #{tpu_custom_call.1} parent=47 // pred_region
          %s376 = sand.u32 %s38, 1
          %s377 = scalar_lea.sflag [#allocation3], %s376
          %s378 = sand.u32 %s38, 1
          %s379 = smul.addr %s378, 4
          %s380 = scalar_lea.vmem [#allocation2], %s379
          %s382 = ssub.s32 64, 64
          %383 = vsyncadd %s377, %s382
          %s384 = smul.addr %s28, 64
          %s385 = scalar_lea.hbm %s0, %s384
          %s387 = sshll.u32 %s380, 4
          %s388 = int_to_ptr.vmem [resolvable:$true] %s387
          %390 = dma.hbm_to_vmem [thread:$0]  %s385, 64, %s388, %s377
        $region52: #{tpu_custom_call.1} parent=47 // pred_fallthru
          _
        // Predicated region
        $region53: #{tpu_custom_call.1} parent=47 // pred_check
          %p391 = pneg %p74
        $region54: #{tpu_custom_call.1} parent=47 // pred_check_branch
          %393 = sbr.rel (%p391) target = $region56
        $region55: #{tpu_custom_call.1} parent=47 // pred_region
          %s394 = sand.u32 %s28, 1
          %s395 = scalar_lea.sflag [#allocation6], %s394
          %s396 = sand.u32 %s64, 1
          %s397 = smul.addr %s396, 8
          %s398 = scalar_lea.vmem [#allocation5], %s397
          %s400 = ssub.s32 128, 128
          %401 = vsyncadd %s395, %s400
          %s402 = smul.addr %s28, 128
          %s403 = scalar_lea.hbm %s1, %s402
          %s405 = sshll.u32 %s398, 4
          %s406 = int_to_ptr.vmem [resolvable:$true] %s405
          %408 = dma.hbm_to_vmem [thread:$0]  %s403, 128, %s406, %s395
        $region56: #{tpu_custom_call.1} parent=47 // pred_fallthru
          _
        // Predicated region
        $region57: #{tpu_custom_call.1} parent=47 // pred_check
          %p409 = pneg %p100
        $region58: #{tpu_custom_call.1} parent=47 // pred_check_branch
          %411 = sbr.rel (%p409) target = $region60
        $region59: #{tpu_custom_call.1} parent=47 // pred_region
          %s412 = sand.u32 %s28, 1
          %s413 = scalar_lea.sflag [#allocation6], %s412
          %s414 = sand.u32 %s90, 1
          %s415 = smul.addr %s414, 4
          %s416 = scalar_lea.vmem [#allocation7], %s415
          %s418 = ssub.s32 64, 64
          %419 = vsyncadd %s413, %s418
          %s420 = smul.addr %s28, 64
          %s421 = scalar_lea.hbm %s2, %s420
          %s423 = sshll.u32 %s416, 4
          %s424 = int_to_ptr.vmem [resolvable:$true] %s423
          %426 = dma.hbm_to_vmem [thread:$0]  %s421, 64, %s424, %s413
        $region60: #{tpu_custom_call.1} parent=47 // pred_fallthru
          _
      $region48: #{tpu_custom_call.1} parent=5 // pred_fallthru
        _
      %p427 = scmp.le.s32.totalorder 1, %s28
      %p428 = scmp.lt.s32.totalorder %s28, 3
      %p429 = pnand %p427, %p428
      %p430 = pneg %p429
      // Predicated region
      $region61: #{tpu_custom_call.1} parent=5 // pred_check
        _
      $region62: #{tpu_custom_call.1} parent=5 // pred_check_branch
        %432 = sbr.rel (%p429) target = $region64
      $region63: #{tpu_custom_call.1} parent=5 // pred_region
        %s433 = ssub.s32 %s28, 1
        %s434 = sand.u32 %s41, 1
        %s435 = scalar_lea.sflag [#allocation3], %s434
        %s436 = sand.u32 %s41, 1
        %s437 = smul.addr %s436, 4
        %s438 = scalar_lea.vmem [#allocation2], %s437
        // Predicated region
        $region65: #{tpu_custom_call.1} parent=63 // pred_check
          %p439 = pneg %p54
        $region66: #{tpu_custom_call.1} parent=63 // pred_check_branch
          %441 = sbr.rel (%p439) target = $region68
        $region67: #{tpu_custom_call.1} parent=63 // pred_region
          %442 = dma.done %s435, 64
        $region68: #{tpu_custom_call.1} parent=63 // pred_fallthru
          _
        %s443 = sand.u32 %s33, 1
        %s444 = scalar_lea.sflag [#allocation6], %s443
        %s445 = sand.u32 %s67, 1
        %s446 = smul.addr %s445, 8
        %s447 = scalar_lea.vmem [#allocation5], %s446
        // Predicated region
        $region69: #{tpu_custom_call.1} parent=63 // pred_check
          %p448 = pneg %p80
        $region70: #{tpu_custom_call.1} parent=63 // pred_check_branch
          %450 = sbr.rel (%p448) target = $region72
        $region71: #{tpu_custom_call.1} parent=63 // pred_region
          %451 = dma.done %s444, 128
        $region72: #{tpu_custom_call.1} parent=63 // pred_fallthru
          _
        %s452 = sand.u32 %s33, 1
        %s453 = scalar_lea.sflag [#allocation6], %s452
        %s454 = sand.u32 %s93, 1
        %s455 = smul.addr %s454, 4
        %s456 = scalar_lea.vmem [#allocation7], %s455
        // Predicated region
        $region73: #{tpu_custom_call.1} parent=63 // pred_check
          %p457 = pneg %p106
        $region74: #{tpu_custom_call.1} parent=63 // pred_check_branch
          %459 = sbr.rel (%p457) target = $region76
        $region75: #{tpu_custom_call.1} parent=63 // pred_region
          %460 = dma.done %s453, 64
        $region76: #{tpu_custom_call.1} parent=63 // pred_fallthru
          _
        // Predicated region
        $region77: #{tpu_custom_call.1} parent=63 // pred_check
          %p461 = pneg %p127
        $region78: #{tpu_custom_call.1} parent=63 // pred_check_branch
          %463 = sbr.rel (%p461) target = $region80
        $region79: #{tpu_custom_call.1} parent=63 // pred_region
          %464 = dma.done [#allocation9], 2048
        $region80: #{tpu_custom_call.1} parent=63 // pred_fallthru
          _
        // Predicated region
        $region81: #{tpu_custom_call.1} parent=63 // pred_check
          %p465 = pneg %p169
        $region82: #{tpu_custom_call.1} parent=63 // pred_check_branch
          %467 = sbr.rel (%p465) target = $region84
        $region83: #{tpu_custom_call.1} parent=63 // pred_region
          %468 = dma.done [#allocation9], 4096
        $region84: #{tpu_custom_call.1} parent=63 // pred_fallthru
          _
        // Predicated region
        $region85: #{tpu_custom_call.1} parent=63 // pred_check
          %p469 = pneg %p211
        $region86: #{tpu_custom_call.1} parent=63 // pred_check_branch
          %471 = sbr.rel (%p469) target = $region88
        $region87: #{tpu_custom_call.1} parent=63 // pred_region
          %472 = dma.done [#allocation12], 2048
        $region88: #{tpu_custom_call.1} parent=63 // pred_fallthru
          _
        %s473 = sand.u32 %s41, 1
        %s474 = scalar_lea.sflag [#allocation3], %s473
        %s475 = sand.u32 %s41, 1
        %s476 = smul.addr %s475, 4
        %s477 = scalar_lea.vmem [#allocation2], %s476
        %p478 = pneg %p54
        %p479 = pneg %p51
        %s480 = sand.u32 %s33, 1
        %s481 = scalar_lea.sflag [#allocation6], %s480
        %s482 = sand.u32 %s67, 1
        %s483 = smul.addr %s482, 8
        %s484 = scalar_lea.vmem [#allocation5], %s483
        %p485 = pneg %p80
        %p486 = pneg %p77
        %s487 = sand.u32 %s33, 1
        %s488 = scalar_lea.sflag [#allocation6], %s487
        %s489 = sand.u32 %s93, 1
        %s490 = smul.addr %s489, 4
        %s491 = scalar_lea.vmem [#allocation7], %s490
        %p492 = pneg %p106
        %p493 = pneg %p103
        %p494 = pneg %p127
        %p495 = pneg %p124
        %p496 = pneg %p148
        %p497 = pneg %p145
        %p498 = pneg %p169
        %p499 = pneg %p166
        %p500 = pneg %p190
        %p501 = pneg %p187
        %p502 = pneg %p211
        %p503 = pneg %p208
        %p504 = pneg %p232
        %p505 = pneg %p229
        %p506 = pneg %p253
        %p507 = pneg %p250
        %p508 = pneg %p274
        %p509 = pneg %p271
        %p510 = pneg %p300
        %p511 = pneg %p297
        %s512 = sand.u32 %s287, 1
        %s513 = scalar_lea.sflag [#allocation4], %s512
        %s514 = sand.u32 %s287, 1
        %s515 = smul.addr %s514, 4
        %s516 = scalar_lea.vmem [#allocation13], %s515
        %v517 = vld [vmem:[%s438] sm:$0xf]
        %v518 = vld [vmem:[%s447] sm:$0xff]
        %v519 = vld [vmem:[#allocation8] sm:$0xff]
        %v520 = vld [vmem:[#allocation8 + $0x8] sm:$0xff]
        %v521 = vld [vmem:[#allocation8 + $0x10] sm:$0xff]
        %v522 = vld [vmem:[#allocation8 + $0x18] sm:$0xff]
        %v523 = vld [vmem:[#allocation8 + $0x20] sm:$0xff]
        %v524 = vld [vmem:[#allocation8 + $0x28] sm:$0xff]
        %v525 = vld [vmem:[#allocation8 + $0x30] sm:$0xff]
        %v526 = vld [vmem:[#allocation8 + $0x38] sm:$0xff]
        %v527 = vld [vmem:[#allocation8 + $0x40] sm:$0xff]
        %v528 = vld [vmem:[#allocation8 + $0x48] sm:$0xff]
        %v529 = vld [vmem:[#allocation8 + $0x50] sm:$0xff]
        %v530 = vld [vmem:[#allocation8 + $0x58] sm:$0xff]
        %v531 = vld [vmem:[#allocation8 + $0x60] sm:$0xff]
        %v532 = vld [vmem:[#allocation8 + $0x68] sm:$0xff]
        %v533 = vld [vmem:[#allocation8 + $0x70] sm:$0xff]
        %v534 = vld [vmem:[#allocation8 + $0x78] sm:$0xff]
        %v535 = vld [vmem:[%s4] sm:$0x1]
        %v537 = vlaneseq
        %v538 = vshrl.u32 %v537, 7
        %v539 = vsub.s32 0, %v538
        %v540 = vrot.slane %v535, %v539
        %542 = vmatprep.subr.mxu0 0.0
        %543 = vmatpush1.msra.mxu0 %v519
        %544 = vmatprep.subr.mxu0 0.0
        %545 = vmatpush1.msra.mxu0 %v520
        %546 = vmatprep.subr.mxu0 0.0
        %547 = vmatpush1.msra.mxu0 %v521
        %548 = vmatprep.subr.mxu0 0.0
        %549 = vmatpush1.msra.mxu0 %v522
        %550 = vmatprep.subr.mxu0 0.0
        %551 = vmatpush1.msra.mxu0 %v523
        %552 = vmatprep.subr.mxu0 0.0
        %553 = vmatpush1.msra.mxu0 %v524
        %554 = vmatprep.subr.mxu0 0.0
        %555 = vmatpush1.msra.mxu0 %v525
        %556 = vmatprep.subr.mxu0 0.0
        %557 = vmatpush1.msra.mxu0 %v526
        %558 = vmatprep.subr.mxu0 0.0
        %559 = vmatpush1.msra.mxu0 %v527
        %560 = vmatprep.subr.mxu0 0.0
        %561 = vmatpush1.msra.mxu0 %v528
        %562 = vmatprep.subr.mxu0 0.0
        %563 = vmatpush1.msra.mxu0 %v529
        %564 = vmatprep.subr.mxu0 0.0
        %565 = vmatpush1.msra.mxu0 %v530
        %566 = vmatprep.subr.mxu0 0.0
        %567 = vmatpush1.msra.mxu0 %v531
        %568 = vmatprep.subr.mxu0 0.0
        %569 = vmatpush1.msra.mxu0 %v532
        %570 = vmatprep.subr.mxu0 0.0
        %571 = vmatpush1.msra.mxu0 %v533
        %572 = vmatprep.subr.mxu0 0.0
        %573 = vmatpush1.msra.mxu0 %v534
        %574 = vmatprep.subr.mxu0 0.0
        %575 = vmatpush1.msra.mxu0 0.0
        %576 = vmatprep.subr.mxu0 0.0
        %577 = vmatpush1.msra.mxu0 0.0
        %578 = vmatprep.subr.mxu0 0.0
        %579 = vmatpush1.msra.mxu0 0.0
        %580 = vmatprep.subr.mxu0 0.0
        %581 = vmatpush1.msra.mxu0 0.0
        %582 = vmatprep.subr.mxu0 0.0
        %583 = vmatpush1.msra.mxu0 0.0
        %584 = vmatprep.subr.mxu0 0.0
        %585 = vmatpush1.msra.mxu0 0.0
        %586 = vmatprep.subr.mxu0 0.0
        %587 = vmatpush1.msra.mxu0 0.0
        %588 = vmatprep.subr.mxu0 0.0
        %589 = vmatpush1.msra.mxu0 0.0
        %590 = vmatprep.subr.mxu0 0.0
        %591 = vmatpush1.msra.mxu0 0.0
        %592 = vmatprep.subr.mxu0 0.0
        %593 = vmatpush1.msra.mxu0 0.0
        %594 = vmatprep.subr.mxu0 0.0
        %595 = vmatpush1.msra.mxu0 0.0
        %596 = vmatprep.subr.mxu0 0.0
        %597 = vmatpush1.msra.mxu0 0.0
        %598 = vmatprep.subr.mxu0 0.0
        %599 = vmatpush1.msra.mxu0 0.0
        %600 = vmatprep.subr.mxu0 0.0
        %601 = vmatpush1.msra.mxu0 0.0
        %602 = vmatprep.subr.mxu0 0.0
        %603 = vmatpush1.msra.mxu0 0.0
        %604 = vmatprep.subr.mxu0 0.0
        %605 = vmatpush1.msra.mxu0 0.0
        %606 = vmatprep.mubr.f32.mxu0 0.0
        %607 = vmatmul.mubr.f32.gmra.mrb[0].mxu0 %v517
        %v608 = vpop.f32.mrb[0].mxu0
        %v609 = vadd.f32 %v540, %v608
        %v610 = vpop.f32.mrb[0].mxu0
        %611 = vdwg.mxu0
        %v612 = vld [vmem:[#allocation10] sm:$0xff]
        %v613 = vld [vmem:[#allocation10 + $0x8] sm:$0xff]
        %v614 = vld [vmem:[#allocation10 + $0x10] sm:$0xff]
        %v615 = vld [vmem:[#allocation10 + $0x18] sm:$0xff]
        %v616 = vld [vmem:[#allocation10 + $0x20] sm:$0xff]
        %v617 = vld [vmem:[#allocation10 + $0x28] sm:$0xff]
        %v618 = vld [vmem:[#allocation10 + $0x30] sm:$0xff]
        %v619 = vld [vmem:[#allocation10 + $0x38] sm:$0xff]
        %v620 = vld [vmem:[#allocation10 + $0x40] sm:$0xff]
        %v621 = vld [vmem:[#allocation10 + $0x48] sm:$0xff]
        %v622 = vld [vmem:[#allocation10 + $0x50] sm:$0xff]
        %v623 = vld [vmem:[#allocation10 + $0x58] sm:$0xff]
        %v624 = vld [vmem:[#allocation10 + $0x60] sm:$0xff]
        %v625 = vld [vmem:[#allocation10 + $0x68] sm:$0xff]
        %v626 = vld [vmem:[#allocation10 + $0x70] sm:$0xff]
        %v627 = vld [vmem:[#allocation10 + $0x78] sm:$0xff]
        %v628 = vld [vmem:[#allocation10 + $0x80] sm:$0xff]
        %v629 = vld [vmem:[#allocation10 + $0x88] sm:$0xff]
        %v630 = vld [vmem:[#allocation10 + $0x90] sm:$0xff]
        %v631 = vld [vmem:[#allocation10 + $0x98] sm:$0xff]
        %v632 = vld [vmem:[#allocation10 + $0xa0] sm:$0xff]
        %v633 = vld [vmem:[#allocation10 + $0xa8] sm:$0xff]
        %v634 = vld [vmem:[#allocation10 + $0xb0] sm:$0xff]
        %v635 = vld [vmem:[#allocation10 + $0xb8] sm:$0xff]
        %v636 = vld [vmem:[#allocation10 + $0xc0] sm:$0xff]
        %v637 = vld [vmem:[#allocation10 + $0xc8] sm:$0xff]
        %v638 = vld [vmem:[#allocation10 + $0xd0] sm:$0xff]
        %v639 = vld [vmem:[#allocation10 + $0xd8] sm:$0xff]
        %v640 = vld [vmem:[#allocation10 + $0xe0] sm:$0xff]
        %v641 = vld [vmem:[#allocation10 + $0xe8] sm:$0xff]
        %v642 = vld [vmem:[#allocation10 + $0xf0] sm:$0xff]
        %v643 = vld [vmem:[#allocation10 + $0xf8] sm:$0xff]
        %v644 = vld [vmem:[%s6] sm:$0x3]
        %v646 = vlaneseq
        %v647 = vshrl.u32 %v646, 7
        %v648 = vsub.s32 0, %v647
        %v649 = vrot.slane %v644, %v648
        %v650 = vlaneseq
        %v651 = vshrl.u32 %v650, 7
        %v652 = vsub.s32 1, %v651
        %v653 = vrot.slane %v644, %v652
        %656 = vmatprep.subr.mxu0 %v613
        %657 = vmatpush1.msra.mxu0 %v612
        %658 = vmatprep.subr.mxu0 %v615
        %659 = vmatpush1.msra.mxu0 %v614
        %660 = vmatprep.subr.mxu0 %v617
        %661 = vmatpush1.msra.mxu0 %v616
        %662 = vmatprep.subr.mxu0 %v619
        %663 = vmatpush1.msra.mxu0 %v618
        %664 = vmatprep.subr.mxu0 %v621
        %665 = vmatpush1.msra.mxu0 %v620
        %666 = vmatprep.subr.mxu0 %v623
        %667 = vmatpush1.msra.mxu0 %v622
        %668 = vmatprep.subr.mxu0 %v625
        %669 = vmatpush1.msra.mxu0 %v624
        %670 = vmatprep.subr.mxu0 %v627
        %671 = vmatpush1.msra.mxu0 %v626
        %672 = vmatprep.subr.mxu0 %v629
        %673 = vmatpush1.msra.mxu0 %v628
        %674 = vmatprep.subr.mxu0 %v631
        %675 = vmatpush1.msra.mxu0 %v630
        %676 = vmatprep.subr.mxu0 %v633
        %677 = vmatpush1.msra.mxu0 %v632
        %678 = vmatprep.subr.mxu0 %v635
        %679 = vmatpush1.msra.mxu0 %v634
        %680 = vmatprep.subr.mxu0 %v637
        %681 = vmatpush1.msra.mxu0 %v636
        %682 = vmatprep.subr.mxu0 %v639
        %683 = vmatpush1.msra.mxu0 %v638
        %684 = vmatprep.subr.mxu0 %v641
        %685 = vmatpush1.msra.mxu0 %v640
        %686 = vmatprep.subr.mxu0 %v643
        %687 = vmatpush1.msra.mxu0 %v642
        %688 = vmatprep.subr.mxu0 0.0
        %689 = vmatpush1.msra.mxu0 0.0
        %690 = vmatprep.subr.mxu0 0.0
        %691 = vmatpush1.msra.mxu0 0.0
        %692 = vmatprep.subr.mxu0 0.0
        %693 = vmatpush1.msra.mxu0 0.0
        %694 = vmatprep.subr.mxu0 0.0
        %695 = vmatpush1.msra.mxu0 0.0
        %696 = vmatprep.subr.mxu0 0.0
        %697 = vmatpush1.msra.mxu0 0.0
        %698 = vmatprep.subr.mxu0 0.0
        %699 = vmatpush1.msra.mxu0 0.0
        %700 = vmatprep.subr.mxu0 0.0
        %701 = vmatpush1.msra.mxu0 0.0
        %702 = vmatprep.subr.mxu0 0.0
        %703 = vmatpush1.msra.mxu0 0.0
        %704 = vmatprep.subr.mxu0 0.0
        %705 = vmatpush1.msra.mxu0 0.0
        %706 = vmatprep.subr.mxu0 0.0
        %707 = vmatpush1.msra.mxu0 0.0
        %708 = vmatprep.subr.mxu0 0.0
        %709 = vmatpush1.msra.mxu0 0.0
        %710 = vmatprep.subr.mxu0 0.0
        %711 = vmatpush1.msra.mxu0 0.0
        %712 = vmatprep.subr.mxu0 0.0
        %713 = vmatpush1.msra.mxu0 0.0
        %714 = vmatprep.subr.mxu0 0.0
        %715 = vmatpush1.msra.mxu0 0.0
        %716 = vmatprep.subr.mxu0 0.0
        %717 = vmatpush1.msra.mxu0 0.0
        %718 = vmatprep.subr.mxu0 0.0
        %719 = vmatpush1.msra.mxu0 0.0
        %720 = vmatprep.mubr.f32.mxu0 0.0
        %721 = vmatmul.mubr.f32.gmra.mrb[0].mxu0 %v518
        %v722 = vpop.f32.mrb[0].mxu0
        %v723 = vadd.f32 %v649, %v722
        %v724 = vpop.f32.mrb[0].mxu0
        %v725 = vadd.f32 %v653, %v724
        %726 = vdwg.mxu0
        %vm727 = vcmask 261120
        %v729 = vsel %vm727, %v609, 0
        %v732 = vsel %vm727, %v723, 0
        %734 = vmatprep.subr.mxu0 0.0
        %735 = vmatpush1.xpose.msra.mxu0 %v732
        %736 = vmatprep.subr.mxu0 0.0
        %737 = vmatpush1.xpose.msra.mxu0 0.0
        %738 = vmatprep.subr.mxu0 0.0
        %739 = vmatpush1.xpose.msra.mxu0 0.0
        %740 = vmatprep.subr.mxu0 0.0
        %741 = vmatpush1.xpose.msra.mxu0 0.0
        %742 = vmatprep.subr.mxu0 0.0
        %743 = vmatpush1.xpose.msra.mxu0 0.0
        %744 = vmatprep.subr.mxu0 0.0
        %745 = vmatpush1.xpose.msra.mxu0 0.0
        %746 = vmatprep.subr.mxu0 0.0
        %747 = vmatpush1.xpose.msra.mxu0 0.0
        %748 = vmatprep.subr.mxu0 0.0
        %749 = vmatpush1.xpose.msra.mxu0 0.0
        %750 = vmatprep.subr.mxu0 0.0
        %751 = vmatpush1.xpose.msra.mxu0 0.0
        %752 = vmatprep.subr.mxu0 0.0
        %753 = vmatpush1.xpose.msra.mxu0 0.0
        %754 = vmatprep.subr.mxu0 0.0
        %755 = vmatpush1.xpose.msra.mxu0 0.0
        %756 = vmatprep.subr.mxu0 0.0
        %757 = vmatpush1.xpose.msra.mxu0 0.0
        %758 = vmatprep.subr.mxu0 0.0
        %759 = vmatpush1.xpose.msra.mxu0 0.0
        %760 = vmatprep.subr.mxu0 0.0
        %761 = vmatpush1.xpose.msra.mxu0 0.0
        %762 = vmatprep.subr.mxu0 0.0
        %763 = vmatpush1.xpose.msra.mxu0 0.0
        %764 = vmatprep.subr.mxu0 0.0
        %765 = vmatpush1.xpose.msra.mxu0 0.0
        %766 = vmatprep.subr.mxu0 0.0
        %767 = vmatpush1.xpose.msra.mxu0 0.0
        %768 = vmatprep.subr.mxu0 0.0
        %769 = vmatpush1.xpose.msra.mxu0 0.0
        %770 = vmatprep.subr.mxu0 0.0
        %771 = vmatpush1.xpose.msra.mxu0 0.0
        %772 = vmatprep.subr.mxu0 0.0
        %773 = vmatpush1.xpose.msra.mxu0 0.0
        %774 = vmatprep.subr.mxu0 0.0
        %775 = vmatpush1.xpose.msra.mxu0 0.0
        %776 = vmatprep.subr.mxu0 0.0
        %777 = vmatpush1.xpose.msra.mxu0 0.0
        %778 = vmatprep.subr.mxu0 0.0
        %779 = vmatpush1.xpose.msra.mxu0 0.0
        %780 = vmatprep.subr.mxu0 0.0
        %781 = vmatpush1.xpose.msra.mxu0 0.0
        %782 = vmatprep.subr.mxu0 0.0
        %783 = vmatpush1.xpose.msra.mxu0 0.0
        %784 = vmatprep.subr.mxu0 0.0
        %785 = vmatpush1.xpose.msra.mxu0 0.0
        %786 = vmatprep.subr.mxu0 0.0
        %787 = vmatpush1.xpose.msra.mxu0 0.0
        %788 = vmatprep.subr.mxu0 0.0
        %789 = vmatpush1.xpose.msra.mxu0 0.0
        %790 = vmatprep.subr.mxu0 0.0
        %791 = vmatpush1.xpose.msra.mxu0 0.0
        %792 = vmatprep.subr.mxu0 0.0
        %793 = vmatpush1.xpose.msra.mxu0 0.0
        %794 = vmatprep.subr.mxu0 0.0
        %795 = vmatpush1.xpose.msra.mxu0 0.0
        %796 = vmatprep.subr.mxu0 0.0
        %797 = vmatpush1.xpose.msra.mxu0 0.0
        %798 = vmatprep.mubr.f32.mxu0 0.0
        %799 = vmatmul.mubr.f32.gmra.mrb[0].mxu0 %v729
        %v800 = vpop.f32.mrb[0].mxu0
        %v801 = vadd.f32 0.0, %v800
        %v802 = vpop.f32.mrb[0].mxu0
        %803 = vdwg.mxu0
        %v804 = vmul.f32 %v801, 0.17677669
        %vm805 = vcmask 60416
        %v806 = vsel %vm805, %v804, -inf
        %807 = vmax.xlane.f32.xlu0 %v806
        %v808 = vpop.xlane.xlu0 %807
        %v809 = vsub.f32 %v804, %v808
        %v810 = vmul.f32 %v809, 1.442695
        %v811 = vpow.pop %v810
        %v812 = vsel %vm805, %v811, 0.0
        %813 = vadd.xlane.f32.xlu0 %v812
        %v814 = vpop.xlane.xlu0 %813
        %vm815 = vcmask 64512
        %v817 = vsel %vm815, %v811, 0
        %819 = vmatprep.subr.mxu0 0.0
        %820 = vmatpush1.msra.mxu0 %v725
        %821 = vmatprep.subr.mxu0 0.0
        %822 = vmatpush1.msra.mxu0 0.0
        %823 = vmatprep.subr.mxu0 0.0
        %824 = vmatpush1.msra.mxu0 0.0
        %825 = vmatprep.subr.mxu0 0.0
        %826 = vmatpush1.msra.mxu0 0.0
        %827 = vmatprep.subr.mxu0 0.0
        %828 = vmatpush1.msra.mxu0 0.0
        %829 = vmatprep.subr.mxu0 0.0
        %830 = vmatpush1.msra.mxu0 0.0
        %831 = vmatprep.subr.mxu0 0.0
        %832 = vmatpush1.msra.mxu0 0.0
        %833 = vmatprep.subr.mxu0 0.0
        %834 = vmatpush1.msra.mxu0 0.0
        %835 = vmatprep.subr.mxu0 0.0
        %836 = vmatpush1.msra.mxu0 0.0
        %837 = vmatprep.subr.mxu0 0.0
        %838 = vmatpush1.msra.mxu0 0.0
        %839 = vmatprep.subr.mxu0 0.0
        %840 = vmatpush1.msra.mxu0 0.0
        %841 = vmatprep.subr.mxu0 0.0
        %842 = vmatpush1.msra.mxu0 0.0
        %843 = vmatprep.subr.mxu0 0.0
        %844 = vmatpush1.msra.mxu0 0.0
        %845 = vmatprep.subr.mxu0 0.0
        %846 = vmatpush1.msra.mxu0 0.0
        %847 = vmatprep.subr.mxu0 0.0
        %848 = vmatpush1.msra.mxu0 0.0
        %849 = vmatprep.subr.mxu0 0.0
        %850 = vmatpush1.msra.mxu0 0.0
        %851 = vmatprep.subr.mxu0 0.0
        %852 = vmatpush1.msra.mxu0 0.0
        %853 = vmatprep.subr.mxu0 0.0
        %854 = vmatpush1.msra.mxu0 0.0
        %855 = vmatprep.subr.mxu0 0.0
        %856 = vmatpush1.msra.mxu0 0.0
        %857 = vmatprep.subr.mxu0 0.0
        %858 = vmatpush1.msra.mxu0 0.0
        %859 = vmatprep.subr.mxu0 0.0
        %860 = vmatpush1.msra.mxu0 0.0
        %861 = vmatprep.subr.mxu0 0.0
        %862 = vmatpush1.msra.mxu0 0.0
        %863 = vmatprep.subr.mxu0 0.0
        %864 = vmatpush1.msra.mxu0 0.0
        %865 = vmatprep.subr.mxu0 0.0
        %866 = vmatpush1.msra.mxu0 0.0
        %867 = vmatprep.subr.mxu0 0.0
        %868 = vmatpush1.msra.mxu0 0.0
        %869 = vmatprep.subr.mxu0 0.0
        %870 = vmatpush1.msra.mxu0 0.0
        %871 = vmatprep.subr.mxu0 0.0
        %872 = vmatpush1.msra.mxu0 0.0
        %873 = vmatprep.subr.mxu0 0.0
        %874 = vmatpush1.msra.mxu0 0.0
        %875 = vmatprep.subr.mxu0 0.0
        %876 = vmatpush1.msra.mxu0 0.0
        %877 = vmatprep.subr.mxu0 0.0
        %878 = vmatpush1.msra.mxu0 0.0
        %879 = vmatprep.subr.mxu0 0.0
        %880 = vmatpush1.msra.mxu0 0.0
        %881 = vmatprep.subr.mxu0 0.0
        %882 = vmatpush1.msra.mxu0 0.0
        %883 = vmatprep.mubr.f32.mxu0 0.0
        %884 = vmatmul.mubr.f32.gmra.mrb[0].mxu0 %v817
        %v885 = vpop.f32.mrb[0].mxu0
        %v886 = vadd.f32 0.0, %v885
        %v887 = vpop.f32.mrb[0].mxu0
        %888 = vdwg.mxu0
        %v889 = vrcp.pop %v814
        %v890 = vmul.f32 %v886, %v889
        %v891 = vld [vmem:[#allocation11] sm:$0xff]
        %v892 = vld [vmem:[#allocation11 + $0x8] sm:$0xff]
        %v893 = vld [vmem:[#allocation11 + $0x10] sm:$0xff]
        %v894 = vld [vmem:[#allocation11 + $0x18] sm:$0xff]
        %895 = vrot.lane.b32.xlu0 %v609, 96
        %v896 = vpop.permute.xlu0 %895
        %897 = vrot.lane.b32.xlu0 %v723, 96
        %v898 = vpop.permute.xlu0 %897
        %v899 = vsel %vm727, %v896, 0
        %v901 = vsel %vm727, %v898, 0
        %903 = vmatprep.subr.mxu0 0.0
        %904 = vmatpush1.xpose.msra.mxu0 %v901
        %905 = vmatprep.subr.mxu0 0.0
        %906 = vmatpush1.xpose.msra.mxu0 0.0
        %907 = vmatprep.subr.mxu0 0.0
        %908 = vmatpush1.xpose.msra.mxu0 0.0
        %909 = vmatprep.subr.mxu0 0.0
        %910 = vmatpush1.xpose.msra.mxu0 0.0
        %911 = vmatprep.subr.mxu0 0.0
        %912 = vmatpush1.xpose.msra.mxu0 0.0
        %913 = vmatprep.subr.mxu0 0.0
        %914 = vmatpush1.xpose.msra.mxu0 0.0
        %915 = vmatprep.subr.mxu0 0.0
        %916 = vmatpush1.xpose.msra.mxu0 0.0
        %917 = vmatprep.subr.mxu0 0.0
        %918 = vmatpush1.xpose.msra.mxu0 0.0
        %919 = vmatprep.subr.mxu0 0.0
        %920 = vmatpush1.xpose.msra.mxu0 0.0
        %921 = vmatprep.subr.mxu0 0.0
        %922 = vmatpush1.xpose.msra.mxu0 0.0
        %923 = vmatprep.subr.mxu0 0.0
        %924 = vmatpush1.xpose.msra.mxu0 0.0
        %925 = vmatprep.subr.mxu0 0.0
        %926 = vmatpush1.xpose.msra.mxu0 0.0
        %927 = vmatprep.subr.mxu0 0.0
        %928 = vmatpush1.xpose.msra.mxu0 0.0
        %929 = vmatprep.subr.mxu0 0.0
        %930 = vmatpush1.xpose.msra.mxu0 0.0
        %931 = vmatprep.subr.mxu0 0.0
        %932 = vmatpush1.xpose.msra.mxu0 0.0
        %933 = vmatprep.subr.mxu0 0.0
        %934 = vmatpush1.xpose.msra.mxu0 0.0
        %935 = vmatprep.subr.mxu0 0.0
        %936 = vmatpush1.xpose.msra.mxu0 0.0
        %937 = vmatprep.subr.mxu0 0.0
        %938 = vmatpush1.xpose.msra.mxu0 0.0
        %939 = vmatprep.subr.mxu0 0.0
        %940 = vmatpush1.xpose.msra.mxu0 0.0
        %941 = vmatprep.subr.mxu0 0.0
        %942 = vmatpush1.xpose.msra.mxu0 0.0
        %943 = vmatprep.subr.mxu0 0.0
        %944 = vmatpush1.xpose.msra.mxu0 0.0
        %945 = vmatprep.subr.mxu0 0.0
        %946 = vmatpush1.xpose.msra.mxu0 0.0
        %947 = vmatprep.subr.mxu0 0.0
        %948 = vmatpush1.xpose.msra.mxu0 0.0
        %949 = vmatprep.subr.mxu0 0.0
        %950 = vmatpush1.xpose.msra.mxu0 0.0
        %951 = vmatprep.subr.mxu0 0.0
        %952 = vmatpush1.xpose.msra.mxu0 0.0
        %953 = vmatprep.subr.mxu0 0.0
        %954 = vmatpush1.xpose.msra.mxu0 0.0
        %955 = vmatprep.subr.mxu0 0.0
        %956 = vmatpush1.xpose.msra.mxu0 0.0
        %957 = vmatprep.subr.mxu0 0.0
        %958 = vmatpush1.xpose.msra.mxu0 0.0
        %959 = vmatprep.subr.mxu0 0.0
        %960 = vmatpush1.xpose.msra.mxu0 0.0
        %961 = vmatprep.subr.mxu0 0.0
        %962 = vmatpush1.xpose.msra.mxu0 0.0
        %963 = vmatprep.subr.mxu0 0.0
        %964 = vmatpush1.xpose.msra.mxu0 0.0
        %965 = vmatprep.subr.mxu0 0.0
        %966 = vmatpush1.xpose.msra.mxu0 0.0
        %967 = vmatprep.mubr.f32.mxu0 0.0
        %968 = vmatmul.mubr.f32.gmra.mrb[0].mxu0 %v899
        %v969 = vpop.f32.mrb[0].mxu0
        %v970 = vadd.f32 0.0, %v969
        %v971 = vpop.f32.mrb[0].mxu0
        %972 = vdwg.mxu0
        %v973 = vmul.f32 %v970, 0.17677669
        %v974 = vsel %vm805, %v973, -inf
        %975 = vmax.xlane.f32.xlu0 %v974
        %v976 = vpop.xlane.xlu0 %975
        %v977 = vsub.f32 %v973, %v976
        %v978 = vmul.f32 %v977, 1.442695
        %v979 = vpow.pop %v978
        %v980 = vsel %vm805, %v979, 0.0
        %981 = vadd.xlane.f32.xlu0 %v980
        %v982 = vpop.xlane.xlu0 %981
        %984 = vrot.lane.b32.xlu0 %v725, 96
        %v985 = vpop.permute.xlu0 %984
        %v988 = vsel %vm815, %v979, 0
        %990 = vmatprep.subr.mxu0 0.0
        %991 = vmatpush1.msra.mxu0 %v985
        %992 = vmatprep.subr.mxu0 0.0
        %993 = vmatpush1.msra.mxu0 0.0
        %994 = vmatprep.subr.mxu0 0.0
        %995 = vmatpush1.msra.mxu0 0.0
        %996 = vmatprep.subr.mxu0 0.0
        %997 = vmatpush1.msra.mxu0 0.0
        %998 = vmatprep.subr.mxu0 0.0
        %999 = vmatpush1.msra.mxu0 0.0
        %1000 = vmatprep.subr.mxu0 0.0
        %1001 = vmatpush1.msra.mxu0 0.0
        %1002 = vmatprep.subr.mxu0 0.0
        %1003 = vmatpush1.msra.mxu0 0.0
        %1004 = vmatprep.subr.mxu0 0.0
        %1005 = vmatpush1.msra.mxu0 0.0
        %1006 = vmatprep.subr.mxu0 0.0
        %1007 = vmatpush1.msra.mxu0 0.0
        %1008 = vmatprep.subr.mxu0 0.0
        %1009 = vmatpush1.msra.mxu0 0.0
        %1010 = vmatprep.subr.mxu0 0.0
        %1011 = vmatpush1.msra.mxu0 0.0
        %1012 = vmatprep.subr.mxu0 0.0
        %1013 = vmatpush1.msra.mxu0 0.0
        %1014 = vmatprep.subr.mxu0 0.0
        %1015 = vmatpush1.msra.mxu0 0.0
        %1016 = vmatprep.subr.mxu0 0.0
        %1017 = vmatpush1.msra.mxu0 0.0
        %1018 = vmatprep.subr.mxu0 0.0
        %1019 = vmatpush1.msra.mxu0 0.0
        %1020 = vmatprep.subr.mxu0 0.0
        %1021 = vmatpush1.msra.mxu0 0.0
        %1022 = vmatprep.subr.mxu0 0.0
        %1023 = vmatpush1.msra.mxu0 0.0
        %1024 = vmatprep.subr.mxu0 0.0
        %1025 = vmatpush1.msra.mxu0 0.0
        %1026 = vmatprep.subr.mxu0 0.0
        %1027 = vmatpush1.msra.mxu0 0.0
        %1028 = vmatprep.subr.mxu0 0.0
        %1029 = vmatpush1.msra.mxu0 0.0
        %1030 = vmatprep.subr.mxu0 0.0
        %1031 = vmatpush1.msra.mxu0 0.0
        %1032 = vmatprep.subr.mxu0 0.0
        %1033 = vmatpush1.msra.mxu0 0.0
        %1034 = vmatprep.subr.mxu0 0.0
        %1035 = vmatpush1.msra.mxu0 0.0
        %1036 = vmatprep.subr.mxu0 0.0
        %1037 = vmatpush1.msra.mxu0 0.0
        %1038 = vmatprep.subr.mxu0 0.0
        %1039 = vmatpush1.msra.mxu0 0.0
        %1040 = vmatprep.subr.mxu0 0.0
        %1041 = vmatpush1.msra.mxu0 0.0
        %1042 = vmatprep.subr.mxu0 0.0
        %1043 = vmatpush1.msra.mxu0 0.0
        %1044 = vmatprep.subr.mxu0 0.0
        %1045 = vmatpush1.msra.mxu0 0.0
        %1046 = vmatprep.subr.mxu0 0.0
        %1047 = vmatpush1.msra.mxu0 0.0
        %1048 = vmatprep.subr.mxu0 0.0
        %1049 = vmatpush1.msra.mxu0 0.0
        %1050 = vmatprep.subr.mxu0 0.0
        %1051 = vmatpush1.msra.mxu0 0.0
        %1052 = vmatprep.subr.mxu0 0.0
        %1053 = vmatpush1.msra.mxu0 0.0
        %1054 = vmatprep.mubr.f32.mxu0 0.0
        %1055 = vmatmul.mubr.f32.gmra.mrb[0].mxu0 %v988
        %v1056 = vpop.f32.mrb[0].mxu0
        %v1057 = vadd.f32 0.0, %v1056
        %v1058 = vpop.f32.mrb[0].mxu0
        %1059 = vdwg.mxu0
        %v1060 = vrcp.pop %v982
        %v1061 = vmul.f32 %v1057, %v1060
        %v1062 = vld [vmem:[#allocation11 + $0x20] sm:$0xff]
        %v1063 = vld [vmem:[#allocation11 + $0x28] sm:$0xff]
        %v1064 = vld [vmem:[#allocation11 + $0x30] sm:$0xff]
        %v1065 = vld [vmem:[#allocation11 + $0x38] sm:$0xff]
        %v1067 = vsel %vm727, %v1061, 0
        %1069 = vmatprep.subr.mxu0 0.0
        %1070 = vmatpush1.msra.mxu0 %v1062
        %1071 = vmatprep.subr.mxu0 0.0
        %1072 = vmatpush1.msra.mxu0 %v1063
        %1073 = vmatprep.subr.mxu0 0.0
        %1074 = vmatpush1.msra.mxu0 %v1064
        %1075 = vmatprep.subr.mxu0 0.0
        %1076 = vmatpush1.msra.mxu0 %v1065
        %1077 = vmatprep.subr.mxu0 0.0
        %1078 = vmatpush1.msra.mxu0 0.0
        %1079 = vmatprep.subr.mxu0 0.0
        %1080 = vmatpush1.msra.mxu0 0.0
        %1081 = vmatprep.subr.mxu0 0.0
        %1082 = vmatpush1.msra.mxu0 0.0
        %1083 = vmatprep.subr.mxu0 0.0
        %1084 = vmatpush1.msra.mxu0 0.0
        %1085 = vmatprep.subr.mxu0 0.0
        %1086 = vmatpush1.msra.mxu0 0.0
        %1087 = vmatprep.subr.mxu0 0.0
        %1088 = vmatpush1.msra.mxu0 0.0
        %1089 = vmatprep.subr.mxu0 0.0
        %1090 = vmatpush1.msra.mxu0 0.0
        %1091 = vmatprep.subr.mxu0 0.0
        %1092 = vmatpush1.msra.mxu0 0.0
        %1093 = vmatprep.subr.mxu0 0.0
        %1094 = vmatpush1.msra.mxu0 0.0
        %1095 = vmatprep.subr.mxu0 0.0
        %1096 = vmatpush1.msra.mxu0 0.0
        %1097 = vmatprep.subr.mxu0 0.0
        %1098 = vmatpush1.msra.mxu0 0.0
        %1099 = vmatprep.subr.mxu0 0.0
        %1100 = vmatpush1.msra.mxu0 0.0
        %1101 = vmatprep.subr.mxu0 0.0
        %1102 = vmatpush1.msra.mxu0 0.0
        %1103 = vmatprep.subr.mxu0 0.0
        %1104 = vmatpush1.msra.mxu0 0.0
        %1105 = vmatprep.subr.mxu0 0.0
        %1106 = vmatpush1.msra.mxu0 0.0
        %1107 = vmatprep.subr.mxu0 0.0
        %1108 = vmatpush1.msra.mxu0 0.0
        %1109 = vmatprep.subr.mxu0 0.0
        %1110 = vmatpush1.msra.mxu0 0.0
        %1111 = vmatprep.subr.mxu0 0.0
        %1112 = vmatpush1.msra.mxu0 0.0
        %1113 = vmatprep.subr.mxu0 0.0
        %1114 = vmatpush1.msra.mxu0 0.0
        %1115 = vmatprep.subr.mxu0 0.0
        %1116 = vmatpush1.msra.mxu0 0.0
        %1117 = vmatprep.subr.mxu0 0.0
        %1118 = vmatpush1.msra.mxu0 0.0
        %1119 = vmatprep.subr.mxu0 0.0
        %1120 = vmatpush1.msra.mxu0 0.0
        %1121 = vmatprep.subr.mxu0 0.0
        %1122 = vmatpush1.msra.mxu0 0.0
        %1123 = vmatprep.subr.mxu0 0.0
        %1124 = vmatpush1.msra.mxu0 0.0
        %1125 = vmatprep.subr.mxu0 0.0
        %1126 = vmatpush1.msra.mxu0 0.0
        %1127 = vmatprep.subr.mxu0 0.0
        %1128 = vmatpush1.msra.mxu0 0.0
        %1129 = vmatprep.subr.mxu0 0.0
        %1130 = vmatpush1.msra.mxu0 0.0
        %1131 = vmatprep.subr.mxu0 0.0
        %1132 = vmatpush1.msra.mxu0 0.0
        %1133 = vmatprep.mubr.f32.mxu0 0.0
        %1134 = vmatmul.mubr.f32.gmra.mrb[0].mxu0 %v1067
        %v1135 = vpop.f32.mrb[0].mxu0
        %v1136 = vadd.f32 0.0, %v1135
        %v1137 = vpop.f32.mrb[0].mxu0
        %1138 = vdwg.mxu0
        %v1140 = vsel %vm727, %v890, 0
        %1142 = vmatprep.subr.mxu0 0.0
        %1143 = vmatpush1.msra.mxu0 %v891
        %1144 = vmatprep.subr.mxu0 0.0
        %1145 = vmatpush1.msra.mxu0 %v892
        %1146 = vmatprep.subr.mxu0 0.0
        %1147 = vmatpush1.msra.mxu0 %v893
        %1148 = vmatprep.subr.mxu0 0.0
        %1149 = vmatpush1.msra.mxu0 %v894
        %1150 = vmatprep.subr.mxu0 0.0
        %1151 = vmatpush1.msra.mxu0 0.0
        %1152 = vmatprep.subr.mxu0 0.0
        %1153 = vmatpush1.msra.mxu0 0.0
        %1154 = vmatprep.subr.mxu0 0.0
        %1155 = vmatpush1.msra.mxu0 0.0
        %1156 = vmatprep.subr.mxu0 0.0
        %1157 = vmatpush1.msra.mxu0 0.0
        %1158 = vmatprep.subr.mxu0 0.0
        %1159 = vmatpush1.msra.mxu0 0.0
        %1160 = vmatprep.subr.mxu0 0.0
        %1161 = vmatpush1.msra.mxu0 0.0
        %1162 = vmatprep.subr.mxu0 0.0
        %1163 = vmatpush1.msra.mxu0 0.0
        %1164 = vmatprep.subr.mxu0 0.0
        %1165 = vmatpush1.msra.mxu0 0.0
        %1166 = vmatprep.subr.mxu0 0.0
        %1167 = vmatpush1.msra.mxu0 0.0
        %1168 = vmatprep.subr.mxu0 0.0
        %1169 = vmatpush1.msra.mxu0 0.0
        %1170 = vmatprep.subr.mxu0 0.0
        %1171 = vmatpush1.msra.mxu0 0.0
        %1172 = vmatprep.subr.mxu0 0.0
        %1173 = vmatpush1.msra.mxu0 0.0
        %1174 = vmatprep.subr.mxu0 0.0
        %1175 = vmatpush1.msra.mxu0 0.0
        %1176 = vmatprep.subr.mxu0 0.0
        %1177 = vmatpush1.msra.mxu0 0.0
        %1178 = vmatprep.subr.mxu0 0.0
        %1179 = vmatpush1.msra.mxu0 0.0
        %1180 = vmatprep.subr.mxu0 0.0
        %1181 = vmatpush1.msra.mxu0 0.0
        %1182 = vmatprep.subr.mxu0 0.0
        %1183 = vmatpush1.msra.mxu0 0.0
        %1184 = vmatprep.subr.mxu0 0.0
        %1185 = vmatpush1.msra.mxu0 0.0
        %1186 = vmatprep.subr.mxu0 0.0
        %1187 = vmatpush1.msra.mxu0 0.0
        %1188 = vmatprep.subr.mxu0 0.0
        %1189 = vmatpush1.msra.mxu0 0.0
        %1190 = vmatprep.subr.mxu0 0.0
        %1191 = vmatpush1.msra.mxu0 0.0
        %1192 = vmatprep.subr.mxu0 0.0
        %1193 = vmatpush1.msra.mxu0 0.0
        %1194 = vmatprep.subr.mxu0 0.0
        %1195 = vmatpush1.msra.mxu0 0.0
        %1196 = vmatprep.subr.mxu0 0.0
        %1197 = vmatpush1.msra.mxu0 0.0
        %1198 = vmatprep.subr.mxu0 0.0
        %1199 = vmatpush1.msra.mxu0 0.0
        %1200 = vmatprep.subr.mxu0 0.0
        %1201 = vmatpush1.msra.mxu0 0.0
        %1202 = vmatprep.subr.mxu0 0.0
        %1203 = vmatpush1.msra.mxu0 0.0
        %1204 = vmatprep.subr.mxu0 0.0
        %1205 = vmatpush1.msra.mxu0 0.0
        %1206 = vmatprep.mubr.f32.mxu0 0.0
        %1207 = vmatmul.mubr.f32.gmra.mrb[0].mxu0 %v1140
        %v1208 = vpop.f32.mrb[0].mxu0
        %v1209 = vadd.f32 %v1136, %v1208
        %v1210 = vpop.f32.mrb[0].mxu0
        %1211 = vdwg.mxu0
        %1212 = vrot.lane.b32.xlu0 %v609, 64
        %v1213 = vpop.permute.xlu0 %1212
        %1214 = vrot.lane.b32.xlu0 %v723, 64
        %v1215 = vpop.permute.xlu0 %1214
        %v1216 = vsel %vm727, %v1213, 0
        %v1218 = vsel %vm727, %v1215, 0
        %1220 = vmatprep.subr.mxu0 0.0
        %1221 = vmatpush1.xpose.msra.mxu0 %v1218
        %1222 = vmatprep.subr.mxu0 0.0
        %1223 = vmatpush1.xpose.msra.mxu0 0.0
        %1224 = vmatprep.subr.mxu0 0.0
        %1225 = vmatpush1.xpose.msra.mxu0 0.0
        %1226 = vmatprep.subr.mxu0 0.0
        %1227 = vmatpush1.xpose.msra.mxu0 0.0
        %1228 = vmatprep.subr.mxu0 0.0
        %1229 = vmatpush1.xpose.msra.mxu0 0.0
        %1230 = vmatprep.subr.mxu0 0.0
        %1231 = vmatpush1.xpose.msra.mxu0 0.0
        %1232 = vmatprep.subr.mxu0 0.0
        %1233 = vmatpush1.xpose.msra.mxu0 0.0
        %1234 = vmatprep.subr.mxu0 0.0
        %1235 = vmatpush1.xpose.msra.mxu0 0.0
        %1236 = vmatprep.subr.mxu0 0.0
        %1237 = vmatpush1.xpose.msra.mxu0 0.0
        %1238 = vmatprep.subr.mxu0 0.0
        %1239 = vmatpush1.xpose.msra.mxu0 0.0
        %1240 = vmatprep.subr.mxu0 0.0
        %1241 = vmatpush1.xpose.msra.mxu0 0.0
        %1242 = vmatprep.subr.mxu0 0.0
        %1243 = vmatpush1.xpose.msra.mxu0 0.0
        %1244 = vmatprep.subr.mxu0 0.0
        %1245 = vmatpush1.xpose.msra.mxu0 0.0
        %1246 = vmatprep.subr.mxu0 0.0
        %1247 = vmatpush1.xpose.msra.mxu0 0.0
        %1248 = vmatprep.subr.mxu0 0.0
        %1249 = vmatpush1.xpose.msra.mxu0 0.0
        %1250 = vmatprep.subr.mxu0 0.0
        %1251 = vmatpush1.xpose.msra.mxu0 0.0
        %1252 = vmatprep.subr.mxu0 0.0
        %1253 = vmatpush1.xpose.msra.mxu0 0.0
        %1254 = vmatprep.subr.mxu0 0.0
        %1255 = vmatpush1.xpose.msra.mxu0 0.0
        %1256 = vmatprep.subr.mxu0 0.0
        %1257 = vmatpush1.xpose.msra.mxu0 0.0
        %1258 = vmatprep.subr.mxu0 0.0
        %1259 = vmatpush1.xpose.msra.mxu0 0.0
        %1260 = vmatprep.subr.mxu0 0.0
        %1261 = vmatpush1.xpose.msra.mxu0 0.0
        %1262 = vmatprep.subr.mxu0 0.0
        %1263 = vmatpush1.xpose.msra.mxu0 0.0
        %1264 = vmatprep.subr.mxu0 0.0
        %1265 = vmatpush1.xpose.msra.mxu0 0.0
        %1266 = vmatprep.subr.mxu0 0.0
        %1267 = vmatpush1.xpose.msra.mxu0 0.0
        %1268 = vmatprep.subr.mxu0 0.0
        %1269 = vmatpush1.xpose.msra.mxu0 0.0
        %1270 = vmatprep.subr.mxu0 0.0
        %1271 = vmatpush1.xpose.msra.mxu0 0.0
        %1272 = vmatprep.subr.mxu0 0.0
        %1273 = vmatpush1.xpose.msra.mxu0 0.0
        %1274 = vmatprep.subr.mxu0 0.0
        %1275 = vmatpush1.xpose.msra.mxu0 0.0
        %1276 = vmatprep.subr.mxu0 0.0
        %1277 = vmatpush1.xpose.msra.mxu0 0.0
        %1278 = vmatprep.subr.mxu0 0.0
        %1279 = vmatpush1.xpose.msra.mxu0 0.0
        %1280 = vmatprep.subr.mxu0 0.0
        %1281 = vmatpush1.xpose.msra.mxu0 0.0
        %1282 = vmatprep.subr.mxu0 0.0
        %1283 = vmatpush1.xpose.msra.mxu0 0.0
        %1284 = vmatprep.mubr.f32.mxu0 0.0
        %1285 = vmatmul.mubr.f32.gmra.mrb[0].mxu0 %v1216
        %v1286 = vpop.f32.mrb[0].mxu0
        %v1287 = vadd.f32 0.0, %v1286
        %v1288 = vpop.f32.mrb[0].mxu0
        %1289 = vdwg.mxu0
        %v1290 = vmul.f32 %v1287, 0.17677669
        %v1291 = vsel %vm805, %v1290, -inf
        %1292 = vmax.xlane.f32.xlu0 %v1291
        %v1293 = vpop.xlane.xlu0 %1292
        %v1294 = vsub.f32 %v1290, %v1293
        %v1295 = vmul.f32 %v1294, 1.442695
        %v1296 = vpow.pop %v1295
        %v1297 = vsel %vm805, %v1296, 0.0
        %1298 = vadd.xlane.f32.xlu0 %v1297
        %v1299 = vpop.xlane.xlu0 %1298
        %1300 = vrot.lane.b32.xlu0 %v725, 64
        %v1301 = vpop.permute.xlu0 %1300
        %v1304 = vsel %vm815, %v1296, 0
        %1306 = vmatprep.subr.mxu0 0.0
        %1307 = vmatpush1.msra.mxu0 %v1301
        %1308 = vmatprep.subr.mxu0 0.0
        %1309 = vmatpush1.msra.mxu0 0.0
        %1310 = vmatprep.subr.mxu0 0.0
        %1311 = vmatpush1.msra.mxu0 0.0
        %1312 = vmatprep.subr.mxu0 0.0
        %1313 = vmatpush1.msra.mxu0 0.0
        %1314 = vmatprep.subr.mxu0 0.0
        %1315 = vmatpush1.msra.mxu0 0.0
        %1316 = vmatprep.subr.mxu0 0.0
        %1317 = vmatpush1.msra.mxu0 0.0
        %1318 = vmatprep.subr.mxu0 0.0
        %1319 = vmatpush1.msra.mxu0 0.0
        %1320 = vmatprep.subr.mxu0 0.0
        %1321 = vmatpush1.msra.mxu0 0.0
        %1322 = vmatprep.subr.mxu0 0.0
        %1323 = vmatpush1.msra.mxu0 0.0
        %1324 = vmatprep.subr.mxu0 0.0
        %1325 = vmatpush1.msra.mxu0 0.0
        %1326 = vmatprep.subr.mxu0 0.0
        %1327 = vmatpush1.msra.mxu0 0.0
        %1328 = vmatprep.subr.mxu0 0.0
        %1329 = vmatpush1.msra.mxu0 0.0
        %1330 = vmatprep.subr.mxu0 0.0
        %1331 = vmatpush1.msra.mxu0 0.0
        %1332 = vmatprep.subr.mxu0 0.0
        %1333 = vmatpush1.msra.mxu0 0.0
        %1334 = vmatprep.subr.mxu0 0.0
        %1335 = vmatpush1.msra.mxu0 0.0
        %1336 = vmatprep.subr.mxu0 0.0
        %1337 = vmatpush1.msra.mxu0 0.0
        %1338 = vmatprep.subr.mxu0 0.0
        %1339 = vmatpush1.msra.mxu0 0.0
        %1340 = vmatprep.subr.mxu0 0.0
        %1341 = vmatpush1.msra.mxu0 0.0
        %1342 = vmatprep.subr.mxu0 0.0
        %1343 = vmatpush1.msra.mxu0 0.0
        %1344 = vmatprep.subr.mxu0 0.0
        %1345 = vmatpush1.msra.mxu0 0.0
        %1346 = vmatprep.subr.mxu0 0.0
        %1347 = vmatpush1.msra.mxu0 0.0
        %1348 = vmatprep.subr.mxu0 0.0
        %1349 = vmatpush1.msra.mxu0 0.0
        %1350 = vmatprep.subr.mxu0 0.0
        %1351 = vmatpush1.msra.mxu0 0.0
        %1352 = vmatprep.subr.mxu0 0.0
        %1353 = vmatpush1.msra.mxu0 0.0
        %1354 = vmatprep.subr.mxu0 0.0
        %1355 = vmatpush1.msra.mxu0 0.0
        %1356 = vmatprep.subr.mxu0 0.0
        %1357 = vmatpush1.msra.mxu0 0.0
        %1358 = vmatprep.subr.mxu0 0.0
        %1359 = vmatpush1.msra.mxu0 0.0
        %1360 = vmatprep.subr.mxu0 0.0
        %1361 = vmatpush1.msra.mxu0 0.0
        %1362 = vmatprep.subr.mxu0 0.0
        %1363 = vmatpush1.msra.mxu0 0.0
        %1364 = vmatprep.subr.mxu0 0.0
        %1365 = vmatpush1.msra.mxu0 0.0
        %1366 = vmatprep.subr.mxu0 0.0
        %1367 = vmatpush1.msra.mxu0 0.0
        %1368 = vmatprep.subr.mxu0 0.0
        %1369 = vmatpush1.msra.mxu0 0.0
        %1370 = vmatprep.mubr.f32.mxu0 0.0
        %1371 = vmatmul.mubr.f32.gmra.mrb[0].mxu0 %v1304
        %v1372 = vpop.f32.mrb[0].mxu0
        %v1373 = vadd.f32 0.0, %v1372
        %v1374 = vpop.f32.mrb[0].mxu0
        %1375 = vdwg.mxu0
        %v1376 = vrcp.pop %v1299
        %v1377 = vmul.f32 %v1373, %v1376
        %v1378 = vld [vmem:[#allocation11 + $0x40] sm:$0xff]
        %v1379 = vld [vmem:[#allocation11 + $0x48] sm:$0xff]
        %v1380 = vld [vmem:[#allocation11 + $0x50] sm:$0xff]
        %v1381 = vld [vmem:[#allocation11 + $0x58] sm:$0xff]
        %v1383 = vsel %vm727, %v1377, 0
        %1385 = vmatprep.subr.mxu0 0.0
        %1386 = vmatpush1.msra.mxu0 %v1378
        %1387 = vmatprep.subr.mxu0 0.0
        %1388 = vmatpush1.msra.mxu0 %v1379
        %1389 = vmatprep.subr.mxu0 0.0
        %1390 = vmatpush1.msra.mxu0 %v1380
        %1391 = vmatprep.subr.mxu0 0.0
        %1392 = vmatpush1.msra.mxu0 %v1381
        %1393 = vmatprep.subr.mxu0 0.0
        %1394 = vmatpush1.msra.mxu0 0.0
        %1395 = vmatprep.subr.mxu0 0.0
        %1396 = vmatpush1.msra.mxu0 0.0
        %1397 = vmatprep.subr.mxu0 0.0
        %1398 = vmatpush1.msra.mxu0 0.0
        %1399 = vmatprep.subr.mxu0 0.0
        %1400 = vmatpush1.msra.mxu0 0.0
        %1401 = vmatprep.subr.mxu0 0.0
        %1402 = vmatpush1.msra.mxu0 0.0
        %1403 = vmatprep.subr.mxu0 0.0
        %1404 = vmatpush1.msra.mxu0 0.0
        %1405 = vmatprep.subr.mxu0 0.0
        %1406 = vmatpush1.msra.mxu0 0.0
        %1407 = vmatprep.subr.mxu0 0.0
        %1408 = vmatpush1.msra.mxu0 0.0
        %1409 = vmatprep.subr.mxu0 0.0
        %1410 = vmatpush1.msra.mxu0 0.0
        %1411 = vmatprep.subr.mxu0 0.0
        %1412 = vmatpush1.msra.mxu0 0.0
        %1413 = vmatprep.subr.mxu0 0.0
        %1414 = vmatpush1.msra.mxu0 0.0
        %1415 = vmatprep.subr.mxu0 0.0
        %1416 = vmatpush1.msra.mxu0 0.0
        %1417 = vmatprep.subr.mxu0 0.0
        %1418 = vmatpush1.msra.mxu0 0.0
        %1419 = vmatprep.subr.mxu0 0.0
        %1420 = vmatpush1.msra.mxu0 0.0
        %1421 = vmatprep.subr.mxu0 0.0
        %1422 = vmatpush1.msra.mxu0 0.0
        %1423 = vmatprep.subr.mxu0 0.0
        %1424 = vmatpush1.msra.mxu0 0.0
        %1425 = vmatprep.subr.mxu0 0.0
        %1426 = vmatpush1.msra.mxu0 0.0
        %1427 = vmatprep.subr.mxu0 0.0
        %1428 = vmatpush1.msra.mxu0 0.0
        %1429 = vmatprep.subr.mxu0 0.0
        %1430 = vmatpush1.msra.mxu0 0.0
        %1431 = vmatprep.subr.mxu0 0.0
        %1432 = vmatpush1.msra.mxu0 0.0
        %1433 = vmatprep.subr.mxu0 0.0
        %1434 = vmatpush1.msra.mxu0 0.0
        %1435 = vmatprep.subr.mxu0 0.0
        %1436 = vmatpush1.msra.mxu0 0.0
        %1437 = vmatprep.subr.mxu0 0.0
        %1438 = vmatpush1.msra.mxu0 0.0
        %1439 = vmatprep.subr.mxu0 0.0
        %1440 = vmatpush1.msra.mxu0 0.0
        %1441 = vmatprep.subr.mxu0 0.0
        %1442 = vmatpush1.msra.mxu0 0.0
        %1443 = vmatprep.subr.mxu0 0.0
        %1444 = vmatpush1.msra.mxu0 0.0
        %1445 = vmatprep.subr.mxu0 0.0
        %1446 = vmatpush1.msra.mxu0 0.0
        %1447 = vmatprep.subr.mxu0 0.0
        %1448 = vmatpush1.msra.mxu0 0.0
        %1449 = vmatprep.mubr.f32.mxu0 0.0
        %1450 = vmatmul.mubr.f32.gmra.mrb[0].mxu0 %v1383
        %v1451 = vpop.f32.mrb[0].mxu0
        %v1452 = vadd.f32 0.0, %v1451
        %v1453 = vpop.f32.mrb[0].mxu0
        %1454 = vdwg.mxu0
        %v1455 = vadd.f32 %v1209, %v1452
        %1456 = vrot.lane.b32.xlu0 %v609, 32
        %v1457 = vpop.permute.xlu0 %1456
        %1458 = vrot.lane.b32.xlu0 %v723, 32
        %v1459 = vpop.permute.xlu0 %1458
        %v1460 = vsel %vm727, %v1457, 0
        %v1462 = vsel %vm727, %v1459, 0
        %1464 = vmatprep.subr.mxu0 0.0
        %1465 = vmatpush1.xpose.msra.mxu0 %v1462
        %1466 = vmatprep.subr.mxu0 0.0
        %1467 = vmatpush1.xpose.msra.mxu0 0.0
        %1468 = vmatprep.subr.mxu0 0.0
        %1469 = vmatpush1.xpose.msra.mxu0 0.0
        %1470 = vmatprep.subr.mxu0 0.0
        %1471 = vmatpush1.xpose.msra.mxu0 0.0
        %1472 = vmatprep.subr.mxu0 0.0
        %1473 = vmatpush1.xpose.msra.mxu0 0.0
        %1474 = vmatprep.subr.mxu0 0.0
        %1475 = vmatpush1.xpose.msra.mxu0 0.0
        %1476 = vmatprep.subr.mxu0 0.0
        %1477 = vmatpush1.xpose.msra.mxu0 0.0
        %1478 = vmatprep.subr.mxu0 0.0
        %1479 = vmatpush1.xpose.msra.mxu0 0.0
        %1480 = vmatprep.subr.mxu0 0.0
        %1481 = vmatpush1.xpose.msra.mxu0 0.0
        %1482 = vmatprep.subr.mxu0 0.0
        %1483 = vmatpush1.xpose.msra.mxu0 0.0
        %1484 = vmatprep.subr.mxu0 0.0
        %1485 = vmatpush1.xpose.msra.mxu0 0.0
        %1486 = vmatprep.subr.mxu0 0.0
        %1487 = vmatpush1.xpose.msra.mxu0 0.0
        %1488 = vmatprep.subr.mxu0 0.0
        %1489 = vmatpush1.xpose.msra.mxu0 0.0
        %1490 = vmatprep.subr.mxu0 0.0
        %1491 = vmatpush1.xpose.msra.mxu0 0.0
        %1492 = vmatprep.subr.mxu0 0.0
        %1493 = vmatpush1.xpose.msra.mxu0 0.0
        %1494 = vmatprep.subr.mxu0 0.0
        %1495 = vmatpush1.xpose.msra.mxu0 0.0
        %1496 = vmatprep.subr.mxu0 0.0
        %1497 = vmatpush1.xpose.msra.mxu0 0.0
        %1498 = vmatprep.subr.mxu0 0.0
        %1499 = vmatpush1.xpose.msra.mxu0 0.0
        %1500 = vmatprep.subr.mxu0 0.0
        %1501 = vmatpush1.xpose.msra.mxu0 0.0
        %1502 = vmatprep.subr.mxu0 0.0
        %1503 = vmatpush1.xpose.msra.mxu0 0.0
        %1504 = vmatprep.subr.mxu0 0.0
        %1505 = vmatpush1.xpose.msra.mxu0 0.0
        %1506 = vmatprep.subr.mxu0 0.0
        %1507 = vmatpush1.xpose.msra.mxu0 0.0
        %1508 = vmatprep.subr.mxu0 0.0
        %1509 = vmatpush1.xpose.msra.mxu0 0.0
        %1510 = vmatprep.subr.mxu0 0.0
        %1511 = vmatpush1.xpose.msra.mxu0 0.0
        %1512 = vmatprep.subr.mxu0 0.0
        %1513 = vmatpush1.xpose.msra.mxu0 0.0
        %1514 = vmatprep.subr.mxu0 0.0
        %1515 = vmatpush1.xpose.msra.mxu0 0.0
        %1516 = vmatprep.subr.mxu0 0.0
        %1517 = vmatpush1.xpose.msra.mxu0 0.0
        %1518 = vmatprep.subr.mxu0 0.0
        %1519 = vmatpush1.xpose.msra.mxu0 0.0
        %1520 = vmatprep.subr.mxu0 0.0
        %1521 = vmatpush1.xpose.msra.mxu0 0.0
        %1522 = vmatprep.subr.mxu0 0.0
        %1523 = vmatpush1.xpose.msra.mxu0 0.0
        %1524 = vmatprep.subr.mxu0 0.0
        %1525 = vmatpush1.xpose.msra.mxu0 0.0
        %1526 = vmatprep.subr.mxu0 0.0
        %1527 = vmatpush1.xpose.msra.mxu0 0.0
        %1528 = vmatprep.mubr.f32.mxu0 0.0
        %1529 = vmatmul.mubr.f32.gmra.mrb[0].mxu0 %v1460
        %v1530 = vpop.f32.mrb[0].mxu0
        %v1531 = vadd.f32 0.0, %v1530
        %v1532 = vpop.f32.mrb[0].mxu0
        %1533 = vdwg.mxu0
        %v1534 = vmul.f32 %v1531, 0.17677669
        %v1535 = vsel %vm805, %v1534, -inf
        %1536 = vmax.xlane.f32.xlu0 %v1535
        %v1537 = vpop.xlane.xlu0 %1536
        %v1538 = vsub.f32 %v1534, %v1537
        %v1539 = vmul.f32 %v1538, 1.442695
        %v1540 = vpow.pop %v1539
        %v1541 = vsel %vm805, %v1540, 0.0
        %1542 = vadd.xlane.f32.xlu0 %v1541
        %v1543 = vpop.xlane.xlu0 %1542
        %1544 = vrot.lane.b32.xlu0 %v725, 32
        %v1545 = vpop.permute.xlu0 %1544
        %v1548 = vsel %vm815, %v1540, 0
        %1550 = vmatprep.subr.mxu0 0.0
        %1551 = vmatpush1.msra.mxu0 %v1545
        %1552 = vmatprep.subr.mxu0 0.0
        %1553 = vmatpush1.msra.mxu0 0.0
        %1554 = vmatprep.subr.mxu0 0.0
        %1555 = vmatpush1.msra.mxu0 0.0
        %1556 = vmatprep.subr.mxu0 0.0
        %1557 = vmatpush1.msra.mxu0 0.0
        %1558 = vmatprep.subr.mxu0 0.0
        %1559 = vmatpush1.msra.mxu0 0.0
        %1560 = vmatprep.subr.mxu0 0.0
        %1561 = vmatpush1.msra.mxu0 0.0
        %1562 = vmatprep.subr.mxu0 0.0
        %1563 = vmatpush1.msra.mxu0 0.0
        %1564 = vmatprep.subr.mxu0 0.0
        %1565 = vmatpush1.msra.mxu0 0.0
        %1566 = vmatprep.subr.mxu0 0.0
        %1567 = vmatpush1.msra.mxu0 0.0
        %1568 = vmatprep.subr.mxu0 0.0
        %1569 = vmatpush1.msra.mxu0 0.0
        %1570 = vmatprep.subr.mxu0 0.0
        %1571 = vmatpush1.msra.mxu0 0.0
        %1572 = vmatprep.subr.mxu0 0.0
        %1573 = vmatpush1.msra.mxu0 0.0
        %1574 = vmatprep.subr.mxu0 0.0
        %1575 = vmatpush1.msra.mxu0 0.0
        %1576 = vmatprep.subr.mxu0 0.0
        %1577 = vmatpush1.msra.mxu0 0.0
        %1578 = vmatprep.subr.mxu0 0.0
        %1579 = vmatpush1.msra.mxu0 0.0
        %1580 = vmatprep.subr.mxu0 0.0
        %1581 = vmatpush1.msra.mxu0 0.0
        %1582 = vmatprep.subr.mxu0 0.0
        %1583 = vmatpush1.msra.mxu0 0.0
        %1584 = vmatprep.subr.mxu0 0.0
        %1585 = vmatpush1.msra.mxu0 0.0
        %1586 = vmatprep.subr.mxu0 0.0
        %1587 = vmatpush1.msra.mxu0 0.0
        %1588 = vmatprep.subr.mxu0 0.0
        %1589 = vmatpush1.msra.mxu0 0.0
        %1590 = vmatprep.subr.mxu0 0.0
        %1591 = vmatpush1.msra.mxu0 0.0
        %1592 = vmatprep.subr.mxu0 0.0
        %1593 = vmatpush1.msra.mxu0 0.0
        %1594 = vmatprep.subr.mxu0 0.0
        %1595 = vmatpush1.msra.mxu0 0.0
        %1596 = vmatprep.subr.mxu0 0.0
        %1597 = vmatpush1.msra.mxu0 0.0
        %1598 = vmatprep.subr.mxu0 0.0
        %1599 = vmatpush1.msra.mxu0 0.0
        %1600 = vmatprep.subr.mxu0 0.0
        %1601 = vmatpush1.msra.mxu0 0.0
        %1602 = vmatprep.subr.mxu0 0.0
        %1603 = vmatpush1.msra.mxu0 0.0
        %1604 = vmatprep.subr.mxu0 0.0
        %1605 = vmatpush1.msra.mxu0 0.0
        %1606 = vmatprep.subr.mxu0 0.0
        %1607 = vmatpush1.msra.mxu0 0.0
        %1608 = vmatprep.subr.mxu0 0.0
        %1609 = vmatpush1.msra.mxu0 0.0
        %1610 = vmatprep.subr.mxu0 0.0
        %1611 = vmatpush1.msra.mxu0 0.0
        %1612 = vmatprep.subr.mxu0 0.0
        %1613 = vmatpush1.msra.mxu0 0.0
        %1614 = vmatprep.mubr.f32.mxu0 0.0
        %1615 = vmatmul.mubr.f32.gmra.mrb[0].mxu0 %v1548
        %v1616 = vpop.f32.mrb[0].mxu0
        %v1617 = vadd.f32 0.0, %v1616
        %v1618 = vpop.f32.mrb[0].mxu0
        %1619 = vdwg.mxu0
        %v1620 = vrcp.pop %v1543
        %v1621 = vmul.f32 %v1617, %v1620
        %v1622 = vld [vmem:[#allocation11 + $0x60] sm:$0xff]
        %v1623 = vld [vmem:[#allocation11 + $0x68] sm:$0xff]
        %v1624 = vld [vmem:[#allocation11 + $0x70] sm:$0xff]
        %v1625 = vld [vmem:[#allocation11 + $0x78] sm:$0xff]
        %v1627 = vsel %vm727, %v1621, 0
        %1629 = vmatprep.subr.mxu0 0.0
        %1630 = vmatpush1.msra.mxu0 %v1622
        %1631 = vmatprep.subr.mxu0 0.0
        %1632 = vmatpush1.msra.mxu0 %v1623
        %1633 = vmatprep.subr.mxu0 0.0
        %1634 = vmatpush1.msra.mxu0 %v1624
        %1635 = vmatprep.subr.mxu0 0.0
        %1636 = vmatpush1.msra.mxu0 %v1625
        %1637 = vmatprep.subr.mxu0 0.0
        %1638 = vmatpush1.msra.mxu0 0.0
        %1639 = vmatprep.subr.mxu0 0.0
        %1640 = vmatpush1.msra.mxu0 0.0
        %1641 = vmatprep.subr.mxu0 0.0
        %1642 = vmatpush1.msra.mxu0 0.0
        %1643 = vmatprep.subr.mxu0 0.0
        %1644 = vmatpush1.msra.mxu0 0.0
        %1645 = vmatprep.subr.mxu0 0.0
        %1646 = vmatpush1.msra.mxu0 0.0
        %1647 = vmatprep.subr.mxu0 0.0
        %1648 = vmatpush1.msra.mxu0 0.0
        %1649 = vmatprep.subr.mxu0 0.0
        %1650 = vmatpush1.msra.mxu0 0.0
        %1651 = vmatprep.subr.mxu0 0.0
        %1652 = vmatpush1.msra.mxu0 0.0
        %1653 = vmatprep.subr.mxu0 0.0
        %1654 = vmatpush1.msra.mxu0 0.0
        %1655 = vmatprep.subr.mxu0 0.0
        %1656 = vmatpush1.msra.mxu0 0.0
        %1657 = vmatprep.subr.mxu0 0.0
        %1658 = vmatpush1.msra.mxu0 0.0
        %1659 = vmatprep.subr.mxu0 0.0
        %1660 = vmatpush1.msra.mxu0 0.0
        %1661 = vmatprep.subr.mxu0 0.0
        %1662 = vmatpush1.msra.mxu0 0.0
        %1663 = vmatprep.subr.mxu0 0.0
        %1664 = vmatpush1.msra.mxu0 0.0
        %1665 = vmatprep.subr.mxu0 0.0
        %1666 = vmatpush1.msra.mxu0 0.0
        %1667 = vmatprep.subr.mxu0 0.0
        %1668 = vmatpush1.msra.mxu0 0.0
        %1669 = vmatprep.subr.mxu0 0.0
        %1670 = vmatpush1.msra.mxu0 0.0
        %1671 = vmatprep.subr.mxu0 0.0
        %1672 = vmatpush1.msra.mxu0 0.0
        %1673 = vmatprep.subr.mxu0 0.0
        %1674 = vmatpush1.msra.mxu0 0.0
        %1675 = vmatprep.subr.mxu0 0.0
        %1676 = vmatpush1.msra.mxu0 0.0
        %1677 = vmatprep.subr.mxu0 0.0
        %1678 = vmatpush1.msra.mxu0 0.0
        %1679 = vmatprep.subr.mxu0 0.0
        %1680 = vmatpush1.msra.mxu0 0.0
        %1681 = vmatprep.subr.mxu0 0.0
        %1682 = vmatpush1.msra.mxu0 0.0
        %1683 = vmatprep.subr.mxu0 0.0
        %1684 = vmatpush1.msra.mxu0 0.0
        %1685 = vmatprep.subr.mxu0 0.0
        %1686 = vmatpush1.msra.mxu0 0.0
        %1687 = vmatprep.subr.mxu0 0.0
        %1688 = vmatpush1.msra.mxu0 0.0
        %1689 = vmatprep.subr.mxu0 0.0
        %1690 = vmatpush1.msra.mxu0 0.0
        %1691 = vmatprep.subr.mxu0 0.0
        %1692 = vmatpush1.msra.mxu0 0.0
        %1693 = vmatprep.mubr.f32.mxu0 0.0
        %1694 = vmatmul.mubr.f32.gmra.mrb[0].mxu0 %v1627
        %v1695 = vpop.f32.mrb[0].mxu0
        %v1696 = vadd.f32 0.0, %v1695
        %v1697 = vpop.f32.mrb[0].mxu0
        %1698 = vdwg.mxu0
        %v1699 = vadd.f32 %v1455, %v1696
        %v1700 = vld [vmem:[%s8] sm:$0x1]
        %v1702 = vlaneseq
        %v1703 = vshrl.u32 %v1702, 7
        %v1704 = vsub.s32 0, %v1703
        %v1705 = vrot.slane %v1700, %v1704
        %v1707 = vadd.f32 %v1699, %v1705
        %v1708 = vld [vmem:[%s456] sm:$0xf]
        %v1709 = vadd.f32 %v1707, %v1708
        %vm1710 = vcmask 1043456
        %v1711 = vsel %vm1710, %v1709, 0.0
        %1712 = vadd.xlane.f32.xlu0 %v1711
        %v1713 = vpop.xlane.xlu0 %1712
        %v1714 = vmul.f32 %v1713, 0.0078125
        %v1715 = vsub.f32 %v1709, %v1714
        %v1716 = vmul.f32 %v1715, %v1715
        %v1717 = vsel %vm1710, %v1716, 0.0
        %1718 = vadd.xlane.f32.xlu0 %v1717
        %v1719 = vpop.xlane.xlu0 %1718
        %v1720 = vmul.f32 %v1719, 0.0078125
        %v1721 = vadd.f32 %v1720, 1e-05
        %v1722 = vrsqrt.pop %v1721
        %v1723 = vmul.f32 %v1715, %v1722
        %v1724 = vld [vmem:[%s9] sm:$0x1]
        %v1726 = vlaneseq
        %v1727 = vshrl.u32 %v1726, 7
        %v1728 = vsub.s32 0, %v1727
        %v1729 = vrot.slane %v1724, %v1728
        %v1731 = vmul.f32 %v1723, %v1729
        %v1732 = vld [vmem:[%s10] sm:$0x1]
        %v1734 = vlaneseq
        %v1735 = vshrl.u32 %v1734, 7
        %v1736 = vsub.s32 0, %v1735
        %v1737 = vrot.slane %v1732, %v1736
        %v1739 = vadd.f32 %v1731, %v1737
        %1740 = vst [vmem:[%s516] sm:$0xf] %v1739
        %s1741 = sand.u32 %s287, 1
        %s1742 = scalar_lea.sflag [#allocation4], %s1741
        %s1743 = sand.u32 %s287, 1
        %s1744 = smul.addr %s1743, 4
        %s1745 = scalar_lea.vmem [#allocation13], %s1744
        // Predicated region
        $region89: #{tpu_custom_call.1} parent=63 // pred_check
          %p1746 = pneg %p297
        $region90: #{tpu_custom_call.1} parent=63 // pred_check_branch
          %1748 = sbr.rel (%p1746) target = $region92
        $region91: #{tpu_custom_call.1} parent=63 // pred_region
          %s1750 = ssub.s32 64, 64
          %1751 = vsyncadd %s1742, %s1750
          %s1752 = smul.addr %s33, 64
          %s1753 = scalar_lea.hbm %s11, %s1752
          %s1755 = sshll.u32 %s1745, 4
          %s1756 = int_to_ptr.vmem [resolvable:$true] %s1755
          %1758 = dma.vmem_to_hbm [thread:$0]  %s1756, 64, %s1753, %s1742
        $region92: #{tpu_custom_call.1} parent=63 // pred_fallthru
          _
      $region64: #{tpu_custom_call.1} parent=5 // pred_fallthru
        _
      %p1759 = scmp.le.s32.totalorder 2, %s28
      // Predicated region
      $region93: #{tpu_custom_call.1} parent=5 // pred_check
        %p1760 = pneg %p1759
      $region94: #{tpu_custom_call.1} parent=5 // pred_check_branch
        %1762 = sbr.rel (%p1760) target = $region96
      $region95: #{tpu_custom_call.1} parent=5 // pred_region
        %s1763 = ssub.s32 %s28, 2
        // Predicated region
        $region97: #{tpu_custom_call.1} parent=95 // pred_check
          %p1764 = pneg %p303
        $region98: #{tpu_custom_call.1} parent=95 // pred_check_branch
          %1766 = sbr.rel (%p1764) target = $region100
        $region99: #{tpu_custom_call.1} parent=95 // pred_region
          %s1767 = sand.u32 %s288, 1
          %s1768 = scalar_lea.sflag [#allocation4], %s1767
          %s1769 = sand.u32 %s288, 1
          %s1770 = smul.addr %s1769, 4
          %s1771 = scalar_lea.vmem [#allocation13], %s1770
          %1772 = dma.done %s1768, 64
        $region100: #{tpu_custom_call.1} parent=95 // pred_fallthru
          _
      $region96: #{tpu_custom_call.1} parent=5 // pred_fallthru
        _
    $region6: #{tpu_custom_call.1} parent=1 // loop_footer
      %s32 = sadd.s32 1, %s28
    $region7: #{tpu_custom_call.1} parent=1 // loop_footer_branch
      %27 = sbr.rel target = $region3
    $region8: #{tpu_custom_call.1} parent=1 // loop_exit
      _
    %1773 = vsyncpa [#allocation3], 1
    %s1774 = scalar_lea.sflag [#allocation3], 1
    %1775 = vsyncpa %s1774, 1
    %1776 = vsyncpa [#allocation6], 1
    %s1777 = scalar_lea.sflag [#allocation6], 1
    %1778 = vsyncpa %s1777, 1
    %1779 = vsyncpa [#allocation9], 1
    %1780 = vsyncpa [#allocation12], 1
    %1781 = vsyncpa [#allocation4], 1
    %s1782 = scalar_lea.sflag [#allocation4], 1
    %1783 = vsyncpa %s1782, 1

</llo_original>
